<compile_context>
chip_gen: v7x
topology: tpu7x:2x2x1
jax: 0.10.0
libtpu: 0.0.40
codegen_flags: <defaults>
</compile_context>

<pallas_src>
import numpy as np
import jax
import jax.numpy as jnp
from jax.experimental import pallas as pl
from jax.experimental.pallas import tpu as pltpu


TILE = 128            # lane-width super-tile (output / contraction granularity)
KPAIR = 2 * TILE      # contraction width presented to the MXU per grid step


def linear_ppi_kernel(oid_ref, k0_ref, k1_ref, fst_ref, lst_ref,
                      x0_ref, x1_ref, w_ref, b_ref, xres_ref,
                      o_ref, acc_ref):
    """Grid = (batch_tiles, total_csr_steps).

    Scalar-prefetch refs (SMEM, flat 1-D int32, indexed by flattened step s):
      oid: output-tile id, k0/k1: gathered input-tile ids of the weight pair,
      fst/lst: first/last step of this output tile's CSR group.
    """
    s = pl.program_id(1)

    @pl.when(fst_ref[s] == 1)
    def _():
        acc_ref[...] = jnp.zeros_like(acc_ref)

    # K=256 bf16 x bf16 -> f32 MXU accumulate.  Odd-degree groups carry one
    # zero second weight half-slab (with k1 == k0), contributing nothing.
    x_cat = jnp.concatenate([x0_ref[...], x1_ref[...]], axis=1)     # (tm, 256)
    acc_ref[...] += jnp.dot(x_cat, w_ref[...],
                            preferred_element_type=jnp.float32)

    @pl.when(lst_ref[s] == 1)
    def _():
        # identity activation; residual=True -> add exact f32 x tile + bias.
        o_ref[...] = (acc_ref[...] + b_ref[...] + xres_ref[...]).astype(o_ref.dtype)


def linear_ppi(x, meta, w_pairs_bf16, bias, *, tm=256, buffered=None):
    """x: (B, D) f32 (already in the kernel/reordered gene basis);
    meta: dict of flat 1-D int32 CSR arrays (oid, k0, k1, first, last);
    w_pairs_bf16: (total_steps, 256, 128) bf16 pre-paired weight slabs (in,out);
    bias: (1, D) f32."""
    B, D = x.shape
    total_steps = int(w_pairs_bf16.shape[0])
    assert w_pairs_bf16.shape[1:] == (KPAIR, TILE)
    assert w_pairs_bf16.dtype == jnp.bfloat16, "pre-cast weights to bf16 once"
    assert D % TILE == 0 and bias.shape == (1, D)

    tm = min(tm, B)
    # TODO(synk): ragged batches (B % tm != 0, or B < 8) need a padded/masked
    # last batch tile; asserted away here.
    assert B % tm == 0 and tm % 8 == 0
    # v7x megacore note: keep >=2 blocks on the "parallel" batch axis when the
    # batch allows (B // tm >= 2), otherwise one TensorCore idles.

    oid = jnp.asarray(meta["oid"], jnp.int32)
    k0 = jnp.asarray(meta["k0"], jnp.int32)
    k1 = jnp.asarray(meta["k1"], jnp.int32)
    fst = jnp.asarray(meta["first"], jnp.int32)
    lst = jnp.asarray(meta["last"], jnp.int32)

    x_bf16 = x.astype(jnp.bfloat16)     # activations change every call

    # Optional deeper pipelining on the data-dependent gathers / weight stream
    # (sweep 3-4 on hardware if DMA latency is exposed).
    xw_kw = {} if buffered is None else {"pipeline_mode": pl.Buffered(buffered)}

    grid = (B // tm, total_steps)
    return pl.pallas_call(
        linear_ppi_kernel,
        out_shape=jax.ShapeDtypeStruct((B, D), x.dtype),
        grid_spec=pltpu.PrefetchScalarGridSpec(
            num_scalar_prefetch=5,
            grid=grid,
            in_specs=[
                # gathered x tile for the first K half
                pl.BlockSpec((tm, TILE),
                             lambda i, s, om, k0m, k1m, fm, lm: (i, k0m[s]),
                             **xw_kw),
                # gathered x tile for the second K half
                pl.BlockSpec((tm, TILE),
                             lambda i, s, om, k0m, k1m, fm, lm: (i, k1m[s]),
                             **xw_kw),
                # pre-paired (256,128) bf16 weight slab for this CSR step
                pl.BlockSpec((None, KPAIR, TILE),
                             lambda i, s, om, k0m, k1m, fm, lm: (s, 0, 0),
                             **xw_kw),
                # bias row for the output tile
                pl.BlockSpec((1, TILE),
                             lambda i, s, om, k0m, k1m, fm, lm: (0, om[s])),
                # exact f32 x tile aligned with the OUTPUT columns (residual)
                pl.BlockSpec((tm, TILE),
                             lambda i, s, om, k0m, k1m, fm, lm: (i, om[s])),
            ],
            out_specs=pl.BlockSpec((tm, TILE),
                                   lambda i, s, om, k0m, k1m, fm, lm: (i, om[s])),
            scratch_shapes=[pltpu.VMEM((tm, TILE), jnp.float32)],
        ),
        compiler_params=pltpu.CompilerParams(
            dimension_semantics=("parallel", "arbitrary"),
        ),
    )(oid, k0, k1, fst, lst, x_bf16, x_bf16, w_pairs_bf16, bias, x)


# ----------------------------------------------------------------------------
# Host-side parameter construction (BlockSparseLinear equivalent + compaction)
# ----------------------------------------------------------------------------

def build_block_sparse_params(key, blocks, block_structure):
    """Masked dense (in, out) weight, boolean mask and bias (original basis)."""
    D = int(sum(blocks))
    offsets = np.concatenate([[0], np.cumsum(np.asarray(blocks))]).astype(np.int64)
    mask = np.zeros((D, D), dtype=bool)
    for (b1, b2) in block_structure:
        mask[offsets[b1]:offsets[b1 + 1], offsets[b2]:offsets[b2 + 1]] = True
    kw, kb = jax.random.split(key)
    bound = 1.0 / float(max(blocks)) ** 0.5   # per-block fan_in init, like nn.Linear
    w_dense = np.asarray(jax.random.uniform(kw, (D, D), jnp.float32, -bound, bound))
    w_dense = (w_dense * mask).astype(np.float32)
    bias = np.asarray(jax.random.uniform(kb, (1, D), jnp.float32, -bound, bound),
                      dtype=np.float32)
    return w_dense, mask, bias


def rcm_gene_order(n_genes, block_structure):
    """Reverse Cuthill-McKee ordering of the gene-gene interaction graph so
    interacting genes land in the same 128-wide super-tile."""
    adj = [set() for _ in range(n_genes)]
    for a, b in block_structure:
        if a != b:
            adj[a].add(b)
            adj[b].add(a)
    deg = [len(a) for a in adj]
    visited = [False] * n_genes
    order = []
    for start in sorted(range(n_genes), key=lambda g: deg[g]):
        if visited[start]:
            continue
        visited[start] = True
        queue = [start]
        qi = 0
        while qi < len(queue):
            g = queue[qi]
            qi += 1
            order.append(g)
            for nb in sorted(adj[g], key=lambda h: deg[h]):
                if not visited[nb]:
                    visited[nb] = True
                    queue.append(nb)
    order.reverse()
    return np.asarray(order, np.int64)          # order[new_gene] = old_gene


def gene_order_to_feature_perm(order, blocks):
    offsets = np.concatenate([[0], np.cumsum(np.asarray(blocks))]).astype(np.int64)
    perm = np.concatenate([np.arange(offsets[g], offsets[g + 1]) for g in order])
    inv = np.empty_like(perm)
    inv[perm] = np.arange(perm.size)
    return perm, inv


def build_paired_tile_csr(w_dense, mask, tile=TILE):
    """Flattened grouped block-CSR over 128-wide super-tiles.  The contributing
    input tiles of each output tile are paired into (2*tile, tile) weight slabs
    so each kernel step sees K=256.  Weights are cast to bf16 ONCE here."""
    D = w_dense.shape[0]
    assert D % tile == 0
    nt = D // tile
    oid, k0, k1, fst, lst = [], [], [], [], []
    slabs = []
    for j in range(nt):
        ks = [k for k in range(nt)
              if mask[k * tile:(k + 1) * tile, j * tile:(j + 1) * tile].any()]
        if not ks:                 # cannot happen with reflexive diagonal blocks
            ks = [j]
        pairs = [(ks[p], ks[p + 1] if p + 1 < len(ks) else None)
                 for p in range(0, len(ks), 2)]
        for pidx, (a, b) in enumerate(pairs):
            oid.append(j)
            k0.append(a)
            k1.append(a if b is None else b)   # duplicated index, zero weight half
            fst.append(1 if pidx == 0 else 0)
            lst.append(1 if pidx == len(pairs) - 1 else 0)
            slab = np.zeros((2 * tile, tile), np.float32)
            slab[:tile] = w_dense[a * tile:(a + 1) * tile, j * tile:(j + 1) * tile]
            if b is not None:
                slab[tile:] = w_dense[b * tile:(b + 1) * tile, j * tile:(j + 1) * tile]
            slabs.append(slab)
    meta = {
        "oid": np.asarray(oid, np.int32),
        "k0": np.asarray(k0, np.int32),
        "k1": np.asarray(k1, np.int32),
        "first": np.asarray(fst, np.int32),
        "last": np.asarray(lst, np.int32),
    }
    w_pairs_bf16 = jnp.asarray(np.stack(slabs), dtype=jnp.bfloat16)
    return meta, w_pairs_bf16


if __name__ == "__main__":
    key = jax.random.PRNGKey(0)

    # Synthetic geneobj: 64 genes, layersize 8 each -> input_dim D = 512.
    n_genes, layersize = 64, 8
    blocks = [layersize] * n_genes

    # Synthetic PPI edges above threshold.
    # TODO(synk): ppi_file csv parsing / pandas groupby has no Pallas
    # equivalent; the resulting block_structure is synthesized in-script.
    ppi_pairs = []
    for g in range(0, n_genes, 3):
        h = (g * 7 + 5) % n_genes
        ppi_pairs.append((g, h))
        ppi_pairs.append((h, g))
    block_structure = list(dict.fromkeys(ppi_pairs))
    # reflexive=True: add diagonal blocks not already present.
    block_structure += [(i, i) for i in range(n_genes)
                        if (i, i) not in block_structure]

    kp, kx = jax.random.split(key)
    # Module parameters in the ORIGINAL gene order (the external semantics).
    w_dense, mask, bias = build_block_sparse_params(kp, blocks, block_structure)
    D = int(sum(blocks))

    # Gene reordering (reverse Cuthill-McKee) -> kernel operates in a permuted
    # basis with fewer nonzero 128x128 super-tiles.
    order = rcm_gene_order(n_genes, block_structure)
    perm, inv_perm = gene_order_to_feature_perm(order, blocks)
    w_perm = w_dense[np.ix_(perm, perm)]
    mask_perm = mask[np.ix_(perm, perm)]
    bias_perm = jnp.asarray(bias[:, perm])

    meta, w_pairs_bf16 = build_paired_tile_csr(w_perm, mask_perm)

    B = 512
    x = jax.random.normal(kx, (B, D), jnp.float32)
    perm_j = jnp.asarray(perm)
    inv_j = jnp.asarray(inv_perm)

    # Permute x into the reordered basis, run the kernel, permute the output
    # back (production would fix the gene order upstream, no runtime permute).
    x_perm = x[:, perm_j]
    out_perm = linear_ppi(x_perm, meta, w_pairs_bf16, bias_perm, tm=256)
    out = jax.block_until_ready(out_perm[:, inv_j])

    # Reference with operands rounded to bf16 (same quantization as the kernel),
    # f32 accumulation -> tight tolerance. Validates the CSR compaction, the
    # K-pairing and the gene-reordering plumbing.
    xq = x.astype(jnp.bfloat16).astype(jnp.float32)
    wq = jnp.asarray(w_dense).astype(jnp.bfloat16).astype(jnp.float32)
    ref_bf16 = xq @ wq + jnp.asarray(bias) + x
    assert out.shape == (B, D) and out.dtype == jnp.float32
    assert jnp.allclose(out, ref_bf16, atol=1e-3, rtol=1e-3)

    # Loose check against the exact f32 module semantics (bf16 matmul error only).
    ref_f32 = x @ jnp.asarray(w_dense) + jnp.asarray(bias) + x
    assert jnp.allclose(out, ref_f32, atol=1e-1, rtol=1e-1)

    print("KERNEL_OK")
</pallas_src>

<mosaic_0001>
module attributes {stable_mosaic.version = 11 : i64} {
  func.func @linear_ppi_kernel(%arg0: i32, %arg1: i32, %arg2: memref<4xi32, #tpu.memory_space<smem>>, %arg3: memref<4xi32, #tpu.memory_space<smem>>, %arg4: memref<4xi32, #tpu.memory_space<smem>>, %arg5: memref<4xi32, #tpu.memory_space<smem>>, %arg6: memref<4xi32, #tpu.memory_space<smem>>, %arg7: memref<256x128xbf16, #tpu.memory_space<vmem>>, %arg8: memref<256x128xbf16, #tpu.memory_space<vmem>>, %arg9: memref<1x256x128xbf16, #tpu.memory_space<vmem>>, %arg10: memref<1x128xf32, #tpu.memory_space<vmem>>, %arg11: memref<256x128xf32, #tpu.memory_space<vmem>>, %arg12: memref<256x128xf32, #tpu.memory_space<vmem>>, %arg13: memref<256x128xf32, #tpu.memory_space<vmem>>) attributes {dimension_semantics = [#tpu.dimension_semantics<parallel>, #tpu.dimension_semantics<arbitrary>], iteration_bounds = array<i64: 2, 4>, scalar_prefetch = 5 : i64, scratch_operands = 1 : i64, tpu.core_type = #tpu.core_type<tc>, window_params = [{transform_indices = @transform_0, window_bounds = array<i64: 256, 128>}, {transform_indices = @transform_1, window_bounds = array<i64: 256, 128>}, {transform_indices = @transform_2, window_bounds = array<i64: 1, 256, 128>}, {transform_indices = @transform_3, window_bounds = array<i64: 1, 128>}, {transform_indices = @transform_4, window_bounds = array<i64: 256, 128>}, {transform_indices = @transform_5, window_bounds = array<i64: 256, 128>}]} {
    %0 = arith.index_cast %arg1 : i32 to index
    %1 = memref.load %arg5[%0] : memref<4xi32, #tpu.memory_space<smem>>
    %c1_i32 = arith.constant 1 : i32
    %2 = arith.cmpi eq, %1, %c1_i32 : i32
    %3 = arith.extui %2 : i1 to i32
    %c0_i32 = arith.constant 0 : i32
    %4 = arith.cmpi ne, %3, %c0_i32 : i32
    scf.if %4 {
      %cst_12 = arith.constant 0.000000e+00 : f32
      %19 = vector.broadcast %cst_12 : f32 to vector<256x128xf32>
      %c0_13 = arith.constant 0 : index
      %c0_14 = arith.constant 0 : index
      %20 = vector.load %arg13[%c0_13, %c0_14] : memref<256x128xf32, #tpu.memory_space<vmem>>, vector<256x128xf32>
      tpu.vector_store %arg13[%c0_13, %c0_14], %19 {strides = array<i32>} : memref<256x128xf32, #tpu.memory_space<vmem>>, vector<256x128xf32>,
    } else {
    }
    %c0 = arith.constant 0 : index
    %c0_0 = arith.constant 0 : index
    %5 = vector.load %arg7[%c0, %c0_0] : memref<256x128xbf16, #tpu.memory_space<vmem>>, vector<256x128xbf16>
    %c0_1 = arith.constant 0 : index
    %c0_2 = arith.constant 0 : index
    %6 = vector.load %arg8[%c0_1, %c0_2] : memref<256x128xbf16, #tpu.memory_space<vmem>>, vector<256x128xbf16>
    %7 = tpu.concatenate %5, %6 in 1 : vector<256x128xbf16>, vector<256x128xbf16> -> vector<256x256xbf16>
    %c0_3 = arith.constant 0 : index
    %c0_4 = arith.constant 0 : index
    %8 = vector.load %arg13[%c0_3, %c0_4] : memref<256x128xf32, #tpu.memory_space<vmem>>, vector<256x128xf32>
    %c0_5 = arith.constant 0 : index
    %c0_6 = arith.constant 0 : index
    %c0_7 = arith.constant 0 : index
    %9 = vector.load %arg9[%c0_5, %c0_6, %c0_7] : memref<1x256x128xbf16, #tpu.memory_space<vmem>>, vector<1x256x128xbf16>
    %10 = vector.shape_cast %9 : vector<1x256x128xbf16> to vector<256x128xbf16>
    %cst = arith.constant dense<0.000000e+00> : vector<256x128xf32>
    %11 = tpu.matmul %7, %10, %cst {dimension_numbers = #tpu.dot_dimension_numbers<[1], [0], [0], [1], [0, 0, 1, 1], [], []>} : vector<256x256xbf16>, vector<256x128xbf16>, vector<256x128xf32> -> vector<256x128xf32>
    %12 = arith.addf %8, %11 : vector<256x128xf32>
    %c0_8 = arith.constant 0 : index
    %c0_9 = arith.constant 0 : index
    %13 = vector.load %arg13[%c0_8, %c0_9] : memref<256x128xf32, #tpu.memory_space<vmem>>, vector<256x128xf32>
    tpu.vector_store %arg13[%c0_8, %c0_9], %12 {strides = array<i32>} : memref<256x128xf32, #tpu.memory_space<vmem>>, vector<256x128xf32>,
    %14 = arith.index_cast %arg1 : i32 to index
    %15 = memref.load %arg6[%14] : memref<4xi32, #tpu.memory_space<smem>>
    %c1_i32_10 = arith.constant 1 : i32
    %16 = arith.cmpi eq, %15, %c1_i32_10 : i32
    %17 = arith.extui %16 : i1 to i32
    %c0_i32_11 = arith.constant 0 : i32
    %18 = arith.cmpi ne, %17, %c0_i32_11 : i32
    scf.if %18 {
      %c0_12 = arith.constant 0 : index
      %c0_13 = arith.constant 0 : index
      %19 = vector.load %arg13[%c0_12, %c0_13] : memref<256x128xf32, #tpu.memory_space<vmem>>, vector<256x128xf32>
      %c0_14 = arith.constant 0 : index
      %c0_15 = arith.constant 0 : index
      %20 = vector.load %arg10[%c0_14, %c0_15] : memref<1x128xf32, #tpu.memory_space<vmem>>, vector<1x128xf32>
      %21 = vector.broadcast %20 : vector<1x128xf32> to vector<256x128xf32>
      %22 = arith.addf %19, %21 : vector<256x128xf32>
      %c0_16 = arith.constant 0 : index
      %c0_17 = arith.constant 0 : index
      %23 = vector.load %arg11[%c0_16, %c0_17] : memref<256x128xf32, #tpu.memory_space<vmem>>, vector<256x128xf32>
      %24 = arith.addf %22, %23 : vector<256x128xf32>
      %c0_18 = arith.constant 0 : index
      %c0_19 = arith.constant 0 : index
      %25 = vector.load %arg12[%c0_18, %c0_19] : memref<256x128xf32, #tpu.memory_space<vmem>>, vector<256x128xf32>
      tpu.vector_store %arg12[%c0_18, %c0_19], %24 {strides = array<i32>} : memref<256x128xf32, #tpu.memory_space<vmem>>, vector<256x128xf32>,
    } else {
    }
    return
  }
  func.func @transform_0(%arg0: i32, %arg1: i32, %arg2: memref<4xi32, #tpu.memory_space<smem>>, %arg3: memref<4xi32, #tpu.memory_space<smem>>, %arg4: memref<4xi32, #tpu.memory_space<smem>>, %arg5: memref<4xi32, #tpu.memory_space<smem>>, %arg6: memref<4xi32, #tpu.memory_space<smem>>) -> (i32, i32) {
    %0 = arith.index_cast %arg1 : i32 to index
    %1 = memref.load %arg3[%0] : memref<4xi32, #tpu.memory_space<smem>>
    %c0_i32 = arith.constant 0 : i32
    return %arg0, %1 : i32, i32
  }
  func.func @transform_1(%arg0: i32, %arg1: i32, %arg2: memref<4xi32, #tpu.memory_space<smem>>, %arg3: memref<4xi32, #tpu.memory_space<smem>>, %arg4: memref<4xi32, #tpu.memory_space<smem>>, %arg5: memref<4xi32, #tpu.memory_space<smem>>, %arg6: memref<4xi32, #tpu.memory_space<smem>>) -> (i32, i32) {
    %0 = arith.index_cast %arg1 : i32 to index
    %1 = memref.load %arg4[%0] : memref<4xi32, #tpu.memory_space<smem>>
    %c0_i32 = arith.constant 0 : i32
    return %arg0, %1 : i32, i32
  }
  func.func @transform_2(%arg0: i32, %arg1: i32, %arg2: memref<4xi32, #tpu.memory_space<smem>>, %arg3: memref<4xi32, #tpu.memory_space<smem>>, %arg4: memref<4xi32, #tpu.memory_space<smem>>, %arg5: memref<4xi32, #tpu.memory_space<smem>>, %arg6: memref<4xi32, #tpu.memory_space<smem>>) -> (i32, i32, i32) {
    %c0_i32 = arith.constant 0 : i32
    %c0_i32_0 = arith.constant 0 : i32
    %c0_i32_1 = arith.constant 0 : i32
    return %arg1, %c0_i32, %c0_i32_0 : i32, i32, i32
  }
  func.func @transform_3(%arg0: i32, %arg1: i32, %arg2: memref<4xi32, #tpu.memory_space<smem>>, %arg3: memref<4xi32, #tpu.memory_space<smem>>, %arg4: memref<4xi32, #tpu.memory_space<smem>>, %arg5: memref<4xi32, #tpu.memory_space<smem>>, %arg6: memref<4xi32, #tpu.memory_space<smem>>) -> (i32, i32) {
    %0 = arith.index_cast %arg1 : i32 to index
    %1 = memref.load %arg2[%0] : memref<4xi32, #tpu.memory_space<smem>>
    %c0_i32 = arith.constant 0 : i32
    %c0_i32_0 = arith.constant 0 : i32
    return %c0_i32, %1 : i32, i32
  }
  func.func @transform_4(%arg0: i32, %arg1: i32, %arg2: memref<4xi32, #tpu.memory_space<smem>>, %arg3: memref<4xi32, #tpu.memory_space<smem>>, %arg4: memref<4xi32, #tpu.memory_space<smem>>, %arg5: memref<4xi32, #tpu.memory_space<smem>>, %arg6: memref<4xi32, #tpu.memory_space<smem>>) -> (i32, i32) {
    %0 = arith.index_cast %arg1 : i32 to index
    %1 = memref.load %arg2[%0] : memref<4xi32, #tpu.memory_space<smem>>
    %c0_i32 = arith.constant 0 : i32
    return %arg0, %1 : i32, i32
  }
  func.func @transform_5(%arg0: i32, %arg1: i32, %arg2: memref<4xi32, #tpu.memory_space<smem>>, %arg3: memref<4xi32, #tpu.memory_space<smem>>, %arg4: memref<4xi32, #tpu.memory_space<smem>>, %arg5: memref<4xi32, #tpu.memory_space<smem>>, %arg6: memref<4xi32, #tpu.memory_space<smem>>) -> (i32, i32) {
    %0 = arith.index_cast %arg1 : i32 to index
    %1 = memref.load %arg2[%0] : memref<4xi32, #tpu.memory_space<smem>>
    %c0_i32 = arith.constant 0 : i32
    return %arg0, %1 : i32, i32
  }
}

</mosaic_0001>

<llo_original>
// kernel: tpu_custom_call.1
$region0: #{tpu_custom_call.1}
  #allocation0 [shape = 'u32[]', space=smem, size = 0x4, offset = 0x4, fixed_abs, tag = 'smem constant byte address 0x4 - core index']
  #allocation1 [shape = 'u32[144,128]{1,0:T(1,128)}', space=vmem, size = 0x12000, scoped, tag = 'internal scratch']
  #allocation2 [shape = 'f32[256,128]{1,0:T(8,128)}', space=vmem, size = 0x20000, scoped, tag = 'scratch operand']
  #allocation3 [shape = 's32[1]{0}', space=sflag, size = 0x4, scoped, tag = 'scoped memory for tpu_custom_call.1']
  #allocation4 [shape = 'u8[512]{0}', space=smem, size = 0x200, scoped, tag = 'prefetched SMEM operand 0']
  #allocation5 [shape = 'u8[512]{0}', space=smem, size = 0x200, scoped, tag = 'prefetched SMEM operand 1']
  #allocation6 [shape = 'u8[512]{0}', space=smem, size = 0x200, scoped, tag = 'prefetched SMEM operand 2']
  #allocation7 [shape = 'u8[512]{0}', space=smem, size = 0x200, scoped, tag = 'prefetched SMEM operand 3']
  #allocation8 [shape = 'u8[512]{0}', space=smem, size = 0x200, scoped, tag = 'prefetched SMEM operand 4']
  %s0 = inlined_call_operand.hbm [shape: s32[4], index: 0, kind: input, shape index: {}]
  %s1 = inlined_call_operand.vmem [shape: s32[4], index: 1, kind: input, shape index: {}]
  %s2 = inlined_call_operand.vmem [shape: s32[4], index: 2, kind: input, shape index: {}]
  %s3 = inlined_call_operand.vmem [shape: s32[4], index: 3, kind: input, shape index: {}]
  %s4 = inlined_call_operand.vmem [shape: s32[4], index: 4, kind: input, shape index: {}]
  %s5 = inlined_call_operand.hbm [shape: bf16[512,512], index: 5, kind: input, shape index: {}]
  %s6 = inlined_call_operand.hbm [shape: bf16[512,512], index: 6, kind: input, shape index: {}]
  %s7 = inlined_call_operand.hbm [shape: bf16[4,256,128], index: 7, kind: input, shape index: {}]
  %s8 = inlined_call_operand.vmem [shape: f32[1,512], index: 8, kind: input, shape index: {}]
  %s9 = inlined_call_operand.hbm [shape: f32[512,512], index: 9, kind: input, shape index: {}]
  %s10 = inlined_call_operand.hbm [shape: f32[512,512], index: 10, kind: output, shape index: {}]
  %s11 = sld [smem:[#allocation0]]
  $region77: #{tpu_custom_call.1} parent=0
    _
  %s13 = ssub.s32 1, %s11
  %s14 = scalar_select 0, %s13, %s11
  %16 = dma.hbm_to_smem %s0, 16, [#allocation4], [#allocation3]
  %s17 = sshll.u32 %s1, 4
  %s18 = int_to_ptr.vmem [resolvable:$true] %s17
  %20 = dma.vmem_to_smem %s18, 16, [#allocation5], [#allocation3]
  %s21 = sshll.u32 %s2, 4
  %s22 = int_to_ptr.vmem [resolvable:$true] %s21
  %24 = dma.vmem_to_smem %s22, 16, [#allocation6], [#allocation3]
  %s25 = sshll.u32 %s3, 4
  %s26 = int_to_ptr.vmem [resolvable:$true] %s25
  %28 = dma.vmem_to_smem %s26, 16, [#allocation7], [#allocation3]
  %s29 = sshll.u32 %s4, 4
  %s30 = int_to_ptr.vmem [resolvable:$true] %s29
  %32 = dma.vmem_to_smem %s30, 16, [#allocation8], [#allocation3]
  %33 = dma.done [#allocation3], 80
  %34 = sfence
  $region1: #{tpu_custom_call.1} parent=0
    #allocation9 [shape = 'u8[131072]{0}', space=vmem, size = 0x20000, scoped, tag = 'input window, operand 5']
    #allocation10 [shape = 's32[2]{0}', space=sflag, size = 0x8, scoped, tag = 'scoped memory for tpu_custom_call.1']
    #allocation11 [shape = 's32[2]{0}', space=sflag, size = 0x8, scoped, tag = 'scoped memory for tpu_custom_call.1']
    #allocation12 [shape = 'u8[131072]{0}', space=vmem, size = 0x20000, scoped, tag = 'input window, operand 6']
    #allocation13 [shape = 's32[2]{0}', space=sflag, size = 0x8, scoped, tag = 'scoped memory for tpu_custom_call.1']
    #allocation14 [shape = 'u8[131072]{0}', space=vmem, size = 0x20000, scoped, tag = 'input window, operand 7']
    #allocation15 [shape = 'u8[262144]{0}', space=vmem, size = 0x40000, scoped, tag = 'input window, operand 9']
    #allocation16 [shape = 's32[2]{0}', space=sflag, size = 0x8, scoped, tag = 'scoped memory for tpu_custom_call.1']
    #allocation17 [shape = 'u8[262144]{0}', space=vmem, size = 0x40000, scoped, tag = 'output window, operand 0']
    %35 = vsyncpa [#allocation10], 0
    %s36 = scalar_lea.sflag [#allocation10], 1
    %37 = vsyncpa %s36, 0
    %38 = vsyncpa [#allocation13], 0
    %s39 = scalar_lea.sflag [#allocation13], 1
    %40 = vsyncpa %s39, 0
    %41 = vsyncpa [#allocation16], 0
    %s42 = scalar_lea.sflag [#allocation16], 1
    %43 = vsyncpa %s42, 0
    %44 = vsyncpa [#allocation11], 0
    %s45 = scalar_lea.sflag [#allocation11], 1
    %46 = vsyncpa %s45, 0
    loop: start=0, step=1, limit=10
    $region2: #{tpu_custom_call.1} parent=1 // loop_pre_header
      _
    $region3: #{tpu_custom_call.1} parent=1 // loop_header
      %s48 = sphi 0, %s52
      %p49 = scmp.ge.s32.totalorder %s48, 10
      %s55 = sphi 0, %s67
      %s56 = sphi 0, %s63
      %s57 = sphi 0, %s55
      %s58 = sphi 0, %s56
      %s59 = sphi 0, %s57
      %s60 = sphi 0, %s58
      %s74 = sphi 0, %s76
      %s77 = sphi 0, %s74
      %s78 = sphi 0, %s77
      %s94 = sphi 0, %s78
      %s104 = sphi 0, %s106
      %s107 = sphi 0, %s104
      %s108 = sphi 0, %s107
      %s124 = sphi 0, %s108
      %s130 = sphi 0, %s132
      %s133 = sphi 0, %s130
      %s134 = sphi 0, %s133
      %s150 = sphi 0, %s134
      %s158 = sphi 0, %s160
      %s161 = sphi 0, %s158
      %s162 = sphi 0, %s161
      %s178 = sphi 0, %s162
      %s188 = sphi 0, %s190
      %s191 = sphi 0, %s188
      %s192 = sphi 0, %s191
      %s208 = sphi 0, %s192
      %s218 = sphi 0, %s220
      %s221 = sphi 0, %s218
      %s222 = sphi 0, %s221
      %s238 = sphi 0, %s222
    $region4: #{tpu_custom_call.1} parent=1 // loop_header_branch
      %51 = sbr.rel (%p49) target = $region8
    $region5: #{tpu_custom_call.1} parent=1 // loop_body
      %s53 = ssub.s32 %s48, 1
      %s54 = ssub.s32 %s48, 2
      %s61 = sadd.s32 1, %s56
      %p62 = scmp.ge.s32.totalorder %s61, 4
      %s63 = scalar_select %p62, 0, %s61
      %s64 = sadd.s32 1, %s55
      %s65 = scalar_select %p62, %s64, %s55
      %p66 = scmp.ge.s32.totalorder %s65, 2
      %s67 = scalar_select %p66, 0, %s65
      %s68 = sld [smem:[#allocation5 + %s56]]
      %s69 = sld [smem:[#allocation5 + %s63]]
      %s70 = ssub.s32 %s55, %s67
      %s71 = ssub.s32 %s68, %s69
      %s72 = sor.u32 %s70, %s71
      %p73 = scmp.eq.s32.totalorder %s72, 0
      %s75 = sadd.s32 %s74, 1
      %s76 = scalar_select %p73, %s74, %s75
      %p79 = pneg %p73
      %p80 = scmp.eq.s32.totalorder %s48, 7
      %p81 = por %p79, %p80
      %p82 = scmp.ne.s32.totalorder %s74, %s77
      %p83 = scmp.eq.s32.totalorder %s48, 0
      %p84 = por %p82, %p83
      %p85 = scmp.ne.s32.totalorder %s74, %s77
      %p86 = scmp.eq.s32.totalorder %s53, 7
      %p87 = por %p85, %p86
      %p88 = scmp.ne.s32.totalorder %s77, %s78
      %p89 = scmp.eq.s32.totalorder %s53, 0
      %p90 = por %p88, %p89
      %p91 = scmp.ne.s32.totalorder %s77, %s78
      %p92 = scmp.eq.s32.totalorder %s54, 7
      %p93 = por %p91, %p92
      %p95 = scmp.ne.s32.totalorder %s78, %s94
      %p96 = scmp.eq.s32.totalorder %s54, 0
      %p97 = por %p95, %p96
      %s98 = sld [smem:[#allocation6 + %s56]]
      %s99 = sld [smem:[#allocation6 + %s63]]
      %s100 = ssub.s32 %s55, %s67
      %s101 = ssub.s32 %s98, %s99
      %s102 = sor.u32 %s100, %s101
      %p103 = scmp.eq.s32.totalorder %s102, 0
      %s105 = sadd.s32 %s104, 1
      %s106 = scalar_select %p103, %s104, %s105
      %p109 = pneg %p103
      %p110 = scmp.eq.s32.totalorder %s48, 7
      %p111 = por %p109, %p110
      %p112 = scmp.ne.s32.totalorder %s104, %s107
      %p113 = scmp.eq.s32.totalorder %s48, 0
      %p114 = por %p112, %p113
      %p115 = scmp.ne.s32.totalorder %s104, %s107
      %p116 = scmp.eq.s32.totalorder %s53, 7
      %p117 = por %p115, %p116
      %p118 = scmp.ne.s32.totalorder %s107, %s108
      %p119 = scmp.eq.s32.totalorder %s53, 0
      %p120 = por %p118, %p119
      %p121 = scmp.ne.s32.totalorder %s107, %s108
      %p122 = scmp.eq.s32.totalorder %s54, 7
      %p123 = por %p121, %p122
      %p125 = scmp.ne.s32.totalorder %s108, %s124
      %p126 = scmp.eq.s32.totalorder %s54, 0
      %p127 = por %p125, %p126
      %s128 = ssub.s32 %s56, %s63
      %p129 = scmp.eq.s32.totalorder %s128, 0
      %s131 = sadd.s32 %s130, 1
      %s132 = scalar_select %p129, %s130, %s131
      %p135 = pneg %p129
      %p136 = scmp.eq.s32.totalorder %s48, 7
      %p137 = por %p135, %p136
      %p138 = scmp.ne.s32.totalorder %s130, %s133
      %p139 = scmp.eq.s32.totalorder %s48, 0
      %p140 = por %p138, %p139
      %p141 = scmp.ne.s32.totalorder %s130, %s133
      %p142 = scmp.eq.s32.totalorder %s53, 7
      %p143 = por %p141, %p142
      %p144 = scmp.ne.s32.totalorder %s133, %s134
      %p145 = scmp.eq.s32.totalorder %s53, 0
      %p146 = por %p144, %p145
      %p147 = scmp.ne.s32.totalorder %s133, %s134
      %p148 = scmp.eq.s32.totalorder %s54, 7
      %p149 = por %p147, %p148
      %p151 = scmp.ne.s32.totalorder %s134, %s150
      %p152 = scmp.eq.s32.totalorder %s54, 0
      %p153 = por %p151, %p152
      %s154 = sld [smem:[#allocation4 + %s56]]
      %s155 = sld [smem:[#allocation4 + %s63]]
      %s156 = ssub.s32 %s154, %s155
      %p157 = scmp.eq.s32.totalorder %s156, 0
      %s159 = sadd.s32 %s158, 1
      %s160 = scalar_select %p157, %s158, %s159
      %p163 = pneg %p157
      %p164 = scmp.eq.s32.totalorder %s48, 7
      %p165 = por %p163, %p164
      %p166 = scmp.ne.s32.totalorder %s158, %s161
      %p167 = scmp.eq.s32.totalorder %s48, 0
      %p168 = por %p166, %p167
      %p169 = scmp.ne.s32.totalorder %s158, %s161
      %p170 = scmp.eq.s32.totalorder %s53, 7
      %p171 = por %p169, %p170
      %p172 = scmp.ne.s32.totalorder %s161, %s162
      %p173 = scmp.eq.s32.totalorder %s53, 0
      %p174 = por %p172, %p173
      %p175 = scmp.ne.s32.totalorder %s161, %s162
      %p176 = scmp.eq.s32.totalorder %s54, 7
      %p177 = por %p175, %p176
      %p179 = scmp.ne.s32.totalorder %s162, %s178
      %p180 = scmp.eq.s32.totalorder %s54, 0
      %p181 = por %p179, %p180
      %s182 = sld [smem:[#allocation4 + %s56]]
      %s183 = sld [smem:[#allocation4 + %s63]]
      %s184 = ssub.s32 %s55, %s67
      %s185 = ssub.s32 %s182, %s183
      %s186 = sor.u32 %s184, %s185
      %p187 = scmp.eq.s32.totalorder %s186, 0
      %s189 = sadd.s32 %s188, 1
      %s190 = scalar_select %p187, %s188, %s189
      %p193 = pneg %p187
      %p194 = scmp.eq.s32.totalorder %s48, 7
      %p195 = por %p193, %p194
      %p196 = scmp.ne.s32.totalorder %s188, %s191
      %p197 = scmp.eq.s32.totalorder %s48, 0
      %p198 = por %p196, %p197
      %p199 = scmp.ne.s32.totalorder %s188, %s191
      %p200 = scmp.eq.s32.totalorder %s53, 7
      %p201 = por %p199, %p200
      %p202 = scmp.ne.s32.totalorder %s191, %s192
      %p203 = scmp.eq.s32.totalorder %s53, 0
      %p204 = por %p202, %p203
      %p205 = scmp.ne.s32.totalorder %s191, %s192
      %p206 = scmp.eq.s32.totalorder %s54, 7
      %p207 = por %p205, %p206
      %p209 = scmp.ne.s32.totalorder %s192, %s208
      %p210 = scmp.eq.s32.totalorder %s54, 0
      %p211 = por %p209, %p210
      %s212 = sld [smem:[#allocation4 + %s56]]
      %s213 = sld [smem:[#allocation4 + %s63]]
      %s214 = ssub.s32 %s55, %s67
      %s215 = ssub.s32 %s212, %s213
      %s216 = sor.u32 %s214, %s215
      %p217 = scmp.eq.s32.totalorder %s216, 0
      %s219 = sadd.s32 %s218, 1
      %s220 = scalar_select %p217, %s218, %s219
      %p223 = pneg %p217
      %p224 = scmp.eq.s32.totalorder %s48, 7
      %p225 = por %p223, %p224
      %p226 = scmp.ne.s32.totalorder %s218, %s221
      %p227 = scmp.eq.s32.totalorder %s48, 0
      %p228 = por %p226, %p227
      %p229 = scmp.ne.s32.totalorder %s218, %s221
      %p230 = scmp.eq.s32.totalorder %s53, 7
      %p231 = por %p229, %p230
      %p232 = scmp.ne.s32.totalorder %s221, %s222
      %p233 = scmp.eq.s32.totalorder %s53, 0
      %p234 = por %p232, %p233
      %p235 = scmp.ne.s32.totalorder %s221, %s222
      %p236 = scmp.eq.s32.totalorder %s54, 7
      %p237 = por %p235, %p236
      %p239 = scmp.ne.s32.totalorder %s222, %s238
      %p240 = scmp.eq.s32.totalorder %s54, 0
      %p241 = por %p239, %p240
      %p242 = scmp.le.s32.totalorder 1, %s48
      %p243 = scmp.lt.s32.totalorder %s48, 9
      %p244 = pnand %p242, %p243
      %p245 = pneg %p244
      // Predicated region
      $region9: #{tpu_custom_call.1} parent=5 // pred_check
        _
      $region10: #{tpu_custom_call.1} parent=5 // pred_check_branch
        %247 = sbr.rel (%p244) target = $region12
      $region11: #{tpu_custom_call.1} parent=5 // pred_region
        %s248 = ssub.s32 %s48, 1
      $region12: #{tpu_custom_call.1} parent=5 // pred_fallthru
        _
      %p249 = scmp.lt.s32.totalorder %s48, 8
      // Predicated region
      $region13: #{tpu_custom_call.1} parent=5 // pred_check
        %p250 = pneg %p249
      $region14: #{tpu_custom_call.1} parent=5 // pred_check_branch
        %252 = sbr.rel (%p250) target = $region16
      $region15: #{tpu_custom_call.1} parent=5 // pred_region
        // Predicated region
        $region17: #{tpu_custom_call.1} parent=15 // pred_check
          %p253 = pneg %p84
        $region18: #{tpu_custom_call.1} parent=15 // pred_check_branch
          %255 = sbr.rel (%p253) target = $region20
        $region19: #{tpu_custom_call.1} parent=15 // pred_region
          %s256 = sand.u32 %s74, 1
          %s257 = scalar_lea.sflag [#allocation10], %s256
          %s258 = sand.u32 %s74, 1
          %s259 = smul.addr %s258, 128
          %s260 = scalar_lea.vmem [#allocation9], %s259
          %s261 = sld [smem:[#allocation5 + %s56]]
          %s262 = smul.u32 32, %s55
          %s264 = ssub.s32 2048, 2048
          %265 = vsyncadd %s257, %s264
          %s266 = smul.addr %s262, 4
          %s267 = sadd.s32 %s261, %s266
          %s268 = smul.addr %s267, 64
          %s269 = scalar_lea.hbm %s5, %s268
          %s270 = sshll.u32 %s260, 4
          %s271 = int_to_ptr.vmem [resolvable:$true] %s270
          %276 = dma.hbm_to_vmem [thread:$0]  %s269, 2048, %s271, %s257, 256, 64, 4
        $region20: #{tpu_custom_call.1} parent=15 // pred_fallthru
          _
        // Predicated region
        $region21: #{tpu_custom_call.1} parent=15 // pred_check
          %p277 = pneg %p114
        $region22: #{tpu_custom_call.1} parent=15 // pred_check_branch
          %279 = sbr.rel (%p277) target = $region24
        $region23: #{tpu_custom_call.1} parent=15 // pred_region
          %s280 = sand.u32 %s48, 1
          %s281 = scalar_lea.sflag [#allocation13], %s280
          %s282 = sand.u32 %s104, 1
          %s283 = smul.addr %s282, 128
          %s284 = scalar_lea.vmem [#allocation12], %s283
          %s285 = sld [smem:[#allocation6 + %s56]]
          %s286 = smul.u32 32, %s55
          %s288 = ssub.s32 2048, 2048
          %289 = vsyncadd %s281, %s288
          %s290 = smul.addr %s286, 4
          %s291 = sadd.s32 %s285, %s290
          %s292 = smul.addr %s291, 64
          %s293 = scalar_lea.hbm %s6, %s292
          %s294 = sshll.u32 %s284, 4
          %s295 = int_to_ptr.vmem [resolvable:$true] %s294
          %300 = dma.hbm_to_vmem [thread:$0]  %s293, 2048, %s295, %s281, 256, 64, 4
        $region24: #{tpu_custom_call.1} parent=15 // pred_fallthru
          _
        // Predicated region
        $region25: #{tpu_custom_call.1} parent=15 // pred_check
          %p301 = pneg %p140
        $region26: #{tpu_custom_call.1} parent=15 // pred_check_branch
          %303 = sbr.rel (%p301) target = $region28
        $region27: #{tpu_custom_call.1} parent=15 // pred_region
          %s304 = sand.u32 %s48, 1
          %s305 = scalar_lea.sflag [#allocation13], %s304
          %s306 = sand.u32 %s130, 1
          %s307 = smul.addr %s306, 128
          %s308 = scalar_lea.vmem [#allocation14], %s307
          %s310 = ssub.s32 2048, 2048
          %311 = vsyncadd %s305, %s310
          %s312 = smul.addr %s56, 32
          %s313 = smul.addr %s312, 64
          %s314 = scalar_lea.hbm %s7, %s313
          %s315 = sshll.u32 %s308, 4
          %s316 = int_to_ptr.vmem [resolvable:$true] %s315
          %321 = dma.hbm_to_vmem [thread:$0]  %s314, 2048, %s316, %s305, 64, 64, 4
        $region28: #{tpu_custom_call.1} parent=15 // pred_fallthru
          _
        // Predicated region
        $region29: #{tpu_custom_call.1} parent=15 // pred_check
          %p322 = pneg %p168
        $region30: #{tpu_custom_call.1} parent=15 // pred_check_branch
          %324 = sbr.rel (%p322) target = $region32
        $region31: #{tpu_custom_call.1} parent=15 // pred_region
          %s325 = sld [smem:[#allocation4 + %s56]]
          %p326 = scmp.lt.s32.totalorder %s325, 3
          %s327 = scalar_select %p326, %s325, 3
          %s328 = scalar_lea.vmem %s8, %s327
          %s329 = sld [smem:[#allocation4 + %s56]]
        $region32: #{tpu_custom_call.1} parent=15 // pred_fallthru
          _
        // Predicated region
        $region33: #{tpu_custom_call.1} parent=15 // pred_check
          %p330 = pneg %p198
        $region34: #{tpu_custom_call.1} parent=15 // pred_check_branch
          %332 = sbr.rel (%p330) target = $region36
        $region35: #{tpu_custom_call.1} parent=15 // pred_region
          %s333 = sand.u32 %s188, 1
          %s334 = scalar_lea.sflag [#allocation16], %s333
          %s335 = sand.u32 %s188, 1
          %s336 = smul.addr %s335, 256
          %s337 = scalar_lea.vmem [#allocation15], %s336
          %s338 = sld [smem:[#allocation4 + %s56]]
          %s339 = smul.u32 32, %s55
          %s341 = ssub.s32 4096, 4096
          %342 = vsyncadd %s334, %s341
          %s343 = smul.addr %s339, 4
          %s344 = sadd.s32 %s338, %s343
          %s345 = smul.addr %s344, 128
          %s346 = scalar_lea.hbm %s9, %s345
          %s347 = sshll.u32 %s337, 4
          %s348 = int_to_ptr.vmem [resolvable:$true] %s347
          %353 = dma.hbm_to_vmem [thread:$0]  %s346, 4096, %s348, %s334, 512, 128, 8
        $region36: #{tpu_custom_call.1} parent=15 // pred_fallthru
          _
      $region16: #{tpu_custom_call.1} parent=5 // pred_fallthru
        _
      %p354 = scmp.le.s32.totalorder 1, %s48
      %p355 = scmp.lt.s32.totalorder %s48, 9
      %p356 = pnand %p354, %p355
      %p357 = pneg %p356
      // Predicated region
      $region37: #{tpu_custom_call.1} parent=5 // pred_check
        _
      $region38: #{tpu_custom_call.1} parent=5 // pred_check_branch
        %359 = sbr.rel (%p356) target = $region40
      $region39: #{tpu_custom_call.1} parent=5 // pred_region
        %s360 = ssub.s32 %s48, 1
        %s361 = sand.u32 %s77, 1
        %s362 = scalar_lea.sflag [#allocation10], %s361
        %s363 = sand.u32 %s77, 1
        %s364 = smul.addr %s363, 128
        %s365 = scalar_lea.vmem [#allocation9], %s364
        // Predicated region
        $region41: #{tpu_custom_call.1} parent=39 // pred_check
          %p366 = pneg %p90
        $region42: #{tpu_custom_call.1} parent=39 // pred_check_branch
          %368 = sbr.rel (%p366) target = $region44
        $region43: #{tpu_custom_call.1} parent=39 // pred_region
          %369 = dma.done %s362, 2048
        $region44: #{tpu_custom_call.1} parent=39 // pred_fallthru
          _
        %s370 = sand.u32 %s53, 1
        %s371 = scalar_lea.sflag [#allocation13], %s370
        %s372 = sand.u32 %s107, 1
        %s373 = smul.addr %s372, 128
        %s374 = scalar_lea.vmem [#allocation12], %s373
        // Predicated region
        $region45: #{tpu_custom_call.1} parent=39 // pred_check
          %p375 = pneg %p120
        $region46: #{tpu_custom_call.1} parent=39 // pred_check_branch
          %377 = sbr.rel (%p375) target = $region48
        $region47: #{tpu_custom_call.1} parent=39 // pred_region
          %378 = dma.done %s371, 2048
        $region48: #{tpu_custom_call.1} parent=39 // pred_fallthru
          _
        %s379 = sand.u32 %s53, 1
        %s380 = scalar_lea.sflag [#allocation13], %s379
        %s381 = sand.u32 %s133, 1
        %s382 = smul.addr %s381, 128
        %s383 = scalar_lea.vmem [#allocation14], %s382
        // Predicated region
        $region49: #{tpu_custom_call.1} parent=39 // pred_check
          %p384 = pneg %p146
        $region50: #{tpu_custom_call.1} parent=39 // pred_check_branch
          %386 = sbr.rel (%p384) target = $region52
        $region51: #{tpu_custom_call.1} parent=39 // pred_region
          %387 = dma.done %s380, 2048
        $region52: #{tpu_custom_call.1} parent=39 // pred_fallthru
          _
        %s388 = sand.u32 %s191, 1
        %s389 = scalar_lea.sflag [#allocation16], %s388
        %s390 = sand.u32 %s191, 1
        %s391 = smul.addr %s390, 256
        %s392 = scalar_lea.vmem [#allocation15], %s391
        // Predicated region
        $region53: #{tpu_custom_call.1} parent=39 // pred_check
          %p393 = pneg %p204
        $region54: #{tpu_custom_call.1} parent=39 // pred_check_branch
          %395 = sbr.rel (%p393) target = $region56
        $region55: #{tpu_custom_call.1} parent=39 // pred_region
          %396 = dma.done %s389, 4096
        $region56: #{tpu_custom_call.1} parent=39 // pred_fallthru
          _
        %s397 = sand.u32 %s77, 1
        %s398 = scalar_lea.sflag [#allocation10], %s397
        %s399 = sand.u32 %s77, 1
        %s400 = smul.addr %s399, 128
        %s401 = scalar_lea.vmem [#allocation9], %s400
        %p402 = pneg %p90
        %p403 = pneg %p87
        %s404 = sand.u32 %s53, 1
        %s405 = scalar_lea.sflag [#allocation13], %s404
        %s406 = sand.u32 %s107, 1
        %s407 = smul.addr %s406, 128
        %s408 = scalar_lea.vmem [#allocation12], %s407
        %p409 = pneg %p120
        %p410 = pneg %p117
        %s411 = sand.u32 %s53, 1
        %s412 = scalar_lea.sflag [#allocation13], %s411
        %s413 = sand.u32 %s133, 1
        %s414 = smul.addr %s413, 128
        %s415 = scalar_lea.vmem [#allocation14], %s414
        %p416 = pneg %p146
        %p417 = pneg %p143
        %s418 = sld [smem:[#allocation4 + %s58]]
        %p419 = scmp.lt.s32.totalorder %s418, 3
        %s420 = scalar_select %p419, %s418, 3
        %s421 = scalar_lea.vmem %s8, %s420
        %p422 = pneg %p174
        %p423 = pneg %p171
        %s424 = sand.u32 %s191, 1
        %s425 = scalar_lea.sflag [#allocation16], %s424
        %s426 = sand.u32 %s191, 1
        %s427 = smul.addr %s426, 256
        %s428 = scalar_lea.vmem [#allocation15], %s427
        %p429 = pneg %p204
        %p430 = pneg %p201
        %p431 = pneg %p234
        %p432 = pneg %p231
        %s433 = sand.u32 %s221, 1
        %s434 = scalar_lea.sflag [#allocation11], %s433
        %s435 = sand.u32 %s221, 1
        %s436 = smul.addr %s435, 256
        %s437 = scalar_lea.vmem [#allocation17], %s436
        %s438 = sld [smem:[#allocation5 + %s58]]
        %s439 = smul.u32 32, %s57
        %s440 = sld [smem:[#allocation6 + %s58]]
        %s441 = smul.u32 32, %s57
        %s442 = sld [smem:[#allocation4 + %s58]]
        %p443 = scmp.lt.s32.totalorder %s442, 3
        %s444 = scalar_select %p443, %s442, 3
        %s445 = scalar_lea.vmem %s8, %s444
        %s446 = sld [smem:[#allocation4 + %s58]]
        %s447 = sld [smem:[#allocation4 + %s58]]
        %s448 = smul.u32 32, %s57
        %s449 = sld [smem:[#allocation4 + %s58]]
        %s450 = smul.u32 32, %s57
        %s452 = sld [smem:[#allocation7 + %s58]]
        %p453 = scmp.eq.s32.totalorder %s452, 1
        // Predicated region
        $region57: #{tpu_custom_call.1} parent=39 // pred_check
          %p454 = pneg %p453
        $region58: #{tpu_custom_call.1} parent=39 // pred_check_branch
          %456 = sbr.rel (%p454) target = $region60
        $region59: #{tpu_custom_call.1} parent=39 // pred_region
          %457 = vst [vmem:[#allocation2] sm:$0xff] 0.0
          %458 = vst [vmem:[#allocation2 + $0x8] sm:$0xff] 0.0
          %459 = vst [vmem:[#allocation2 + $0x10] sm:$0xff] 0.0
          %460 = vst [vmem:[#allocation2 + $0x18] sm:$0xff] 0.0
          %461 = vst [vmem:[#allocation2 + $0x20] sm:$0xff] 0.0
          %462 = vst [vmem:[#allocation2 + $0x28] sm:$0xff] 0.0
          %463 = vst [vmem:[#allocation2 + $0x30] sm:$0xff] 0.0
          %464 = vst [vmem:[#allocation2 + $0x38] sm:$0xff] 0.0
          %465 = vst [vmem:[#allocation2 + $0x40] sm:$0xff] 0.0
          %466 = vst [vmem:[#allocation2 + $0x48] sm:$0xff] 0.0
          %467 = vst [vmem:[#allocation2 + $0x50] sm:$0xff] 0.0
          %468 = vst [vmem:[#allocation2 + $0x58] sm:$0xff] 0.0
          %469 = vst [vmem:[#allocation2 + $0x60] sm:$0xff] 0.0
          %470 = vst [vmem:[#allocation2 + $0x68] sm:$0xff] 0.0
          %471 = vst [vmem:[#allocation2 + $0x70] sm:$0xff] 0.0
          %472 = vst [vmem:[#allocation2 + $0x78] sm:$0xff] 0.0
          %473 = vst [vmem:[#allocation2 + $0x80] sm:$0xff] 0.0
          %474 = vst [vmem:[#allocation2 + $0x88] sm:$0xff] 0.0
          %475 = vst [vmem:[#allocation2 + $0x90] sm:$0xff] 0.0
          %476 = vst [vmem:[#allocation2 + $0x98] sm:$0xff] 0.0
          %477 = vst [vmem:[#allocation2 + $0xa0] sm:$0xff] 0.0
          %478 = vst [vmem:[#allocation2 + $0xa8] sm:$0xff] 0.0
          %479 = vst [vmem:[#allocation2 + $0xb0] sm:$0xff] 0.0
          %480 = vst [vmem:[#allocation2 + $0xb8] sm:$0xff] 0.0
          %481 = vst [vmem:[#allocation2 + $0xc0] sm:$0xff] 0.0
          %482 = vst [vmem:[#allocation2 + $0xc8] sm:$0xff] 0.0
          %483 = vst [vmem:[#allocation2 + $0xd0] sm:$0xff] 0.0
          %484 = vst [vmem:[#allocation2 + $0xd8] sm:$0xff] 0.0
          %485 = vst [vmem:[#allocation2 + $0xe0] sm:$0xff] 0.0
          %486 = vst [vmem:[#allocation2 + $0xe8] sm:$0xff] 0.0
          %487 = vst [vmem:[#allocation2 + $0xf0] sm:$0xff] 0.0
          %488 = vst [vmem:[#allocation2 + $0xf8] sm:$0xff] 0.0
        $region60: #{tpu_custom_call.1} parent=39 // pred_fallthru
          _
        %v489 = vld [vmem:[%s365] sm:$0xf]
        %v490 = vld [vmem:[%s365 + $0x4] sm:$0xf]
        %v491 = vld [vmem:[%s365 + $0x8] sm:$0xf]
        %v492 = vld [vmem:[%s365 + $0xc] sm:$0xf]
        %v493 = vld [vmem:[%s365 + $0x10] sm:$0xf]
        %v494 = vld [vmem:[%s365 + $0x14] sm:$0xf]
        %v495 = vld [vmem:[%s365 + $0x18] sm:$0xf]
        %v496 = vld [vmem:[%s365 + $0x1c] sm:$0xf]
        %v497 = vld [vmem:[%s365 + $0x20] sm:$0xf]
        %v498 = vld [vmem:[%s365 + $0x24] sm:$0xf]
        %v499 = vld [vmem:[%s365 + $0x28] sm:$0xf]
        %v500 = vld [vmem:[%s365 + $0x2c] sm:$0xf]
        %v501 = vld [vmem:[%s365 + $0x30] sm:$0xf]
        %v502 = vld [vmem:[%s365 + $0x34] sm:$0xf]
        %v503 = vld [vmem:[%s365 + $0x38] sm:$0xf]
        %v504 = vld [vmem:[%s365 + $0x3c] sm:$0xf]
        %v505 = vld [vmem:[%s365 + $0x40] sm:$0xf]
        %v506 = vld [vmem:[%s365 + $0x44] sm:$0xf]
        %v507 = vld [vmem:[%s365 + $0x48] sm:$0xf]
        %v508 = vld [vmem:[%s365 + $0x4c] sm:$0xf]
        %v509 = vld [vmem:[%s365 + $0x50] sm:$0xf]
        %v510 = vld [vmem:[%s365 + $0x54] sm:$0xf]
        %v511 = vld [vmem:[%s365 + $0x58] sm:$0xf]
        %v512 = vld [vmem:[%s365 + $0x5c] sm:$0xf]
        %v513 = vld [vmem:[%s365 + $0x60] sm:$0xf]
        %v514 = vld [vmem:[%s365 + $0x64] sm:$0xf]
        %v515 = vld [vmem:[%s365 + $0x68] sm:$0xf]
        %v516 = vld [vmem:[%s365 + $0x6c] sm:$0xf]
        %v517 = vld [vmem:[%s365 + $0x70] sm:$0xf]
        %v518 = vld [vmem:[%s365 + $0x74] sm:$0xf]
        %v519 = vld [vmem:[%s365 + $0x78] sm:$0xf]
        %v520 = vld [vmem:[%s365 + $0x7c] sm:$0xf]
        %v521 = vld [vmem:[%s374] sm:$0xf]
        %v522 = vld [vmem:[%s374 + $0x4] sm:$0xf]
        %v523 = vld [vmem:[%s374 + $0x8] sm:$0xf]
        %v524 = vld [vmem:[%s374 + $0xc] sm:$0xf]
        %v525 = vld [vmem:[%s374 + $0x10] sm:$0xf]
        %v526 = vld [vmem:[%s374 + $0x14] sm:$0xf]
        %v527 = vld [vmem:[%s374 + $0x18] sm:$0xf]
        %v528 = vld [vmem:[%s374 + $0x1c] sm:$0xf]
        %v529 = vld [vmem:[%s374 + $0x20] sm:$0xf]
        %v530 = vld [vmem:[%s374 + $0x24] sm:$0xf]
        %v531 = vld [vmem:[%s374 + $0x28] sm:$0xf]
        %v532 = vld [vmem:[%s374 + $0x2c] sm:$0xf]
        %v533 = vld [vmem:[%s374 + $0x30] sm:$0xf]
        %v534 = vld [vmem:[%s374 + $0x34] sm:$0xf]
        %v535 = vld [vmem:[%s374 + $0x38] sm:$0xf]
        %v536 = vld [vmem:[%s374 + $0x3c] sm:$0xf]
        %v537 = vld [vmem:[%s374 + $0x40] sm:$0xf]
        %v538 = vld [vmem:[%s374 + $0x44] sm:$0xf]
        %v539 = vld [vmem:[%s374 + $0x48] sm:$0xf]
        %v540 = vld [vmem:[%s374 + $0x4c] sm:$0xf]
        %v541 = vld [vmem:[%s374 + $0x50] sm:$0xf]
        %v542 = vld [vmem:[%s374 + $0x54] sm:$0xf]
        %v543 = vld [vmem:[%s374 + $0x58] sm:$0xf]
        %v544 = vld [vmem:[%s374 + $0x5c] sm:$0xf]
        %v545 = vld [vmem:[%s374 + $0x60] sm:$0xf]
        %v546 = vld [vmem:[%s374 + $0x64] sm:$0xf]
        %v547 = vld [vmem:[%s374 + $0x68] sm:$0xf]
        %v548 = vld [vmem:[%s374 + $0x6c] sm:$0xf]
        %v549 = vld [vmem:[%s374 + $0x70] sm:$0xf]
        %v550 = vld [vmem:[%s374 + $0x74] sm:$0xf]
        %v551 = vld [vmem:[%s374 + $0x78] sm:$0xf]
        %v552 = vld [vmem:[%s374 + $0x7c] sm:$0xf]
        %v585 = vunpack.c.l.b16 %v489
        %v586 = vunpack.c.l.b16 %v490
        %v587 = vunpack.c.l.b16 %v491
        %v588 = vunpack.c.l.b16 %v492
        %v589 = vunpack.c.l.b16 %v493
        %v590 = vunpack.c.l.b16 %v494
        %v591 = vunpack.c.l.b16 %v495
        %v592 = vunpack.c.l.b16 %v496
        %v593 = vunpack.c.l.b16 %v497
        %v594 = vunpack.c.l.b16 %v498
        %v595 = vunpack.c.l.b16 %v499
        %v596 = vunpack.c.l.b16 %v500
        %v597 = vunpack.c.l.b16 %v501
        %v598 = vunpack.c.l.b16 %v502
        %v599 = vunpack.c.l.b16 %v503
        %v600 = vunpack.c.l.b16 %v504
        %v601 = vunpack.c.l.b16 %v505
        %v602 = vunpack.c.l.b16 %v506
        %v603 = vunpack.c.l.b16 %v507
        %v604 = vunpack.c.l.b16 %v508
        %v605 = vunpack.c.l.b16 %v509
        %v606 = vunpack.c.l.b16 %v510
        %v607 = vunpack.c.l.b16 %v511
        %v608 = vunpack.c.l.b16 %v512
        %v609 = vunpack.c.l.b16 %v513
        %v610 = vunpack.c.l.b16 %v514
        %v611 = vunpack.c.l.b16 %v515
        %v612 = vunpack.c.l.b16 %v516
        %v613 = vunpack.c.l.b16 %v517
        %v614 = vunpack.c.l.b16 %v518
        %v615 = vunpack.c.l.b16 %v519
        %v616 = vunpack.c.l.b16 %v520
        %v617 = vpack.c.b16 %v586, %v585
        %v618 = vpack.c.b16 %v588, %v587
        %v619 = vpack.c.b16 %v590, %v589
        %v620 = vpack.c.b16 %v592, %v591
        %v621 = vpack.c.b16 %v594, %v593
        %v622 = vpack.c.b16 %v596, %v595
        %v623 = vpack.c.b16 %v598, %v597
        %v624 = vpack.c.b16 %v600, %v599
        %v625 = vpack.c.b16 %v602, %v601
        %v626 = vpack.c.b16 %v604, %v603
        %v627 = vpack.c.b16 %v606, %v605
        %v628 = vpack.c.b16 %v608, %v607
        %v629 = vpack.c.b16 %v610, %v609
        %v630 = vpack.c.b16 %v612, %v611
        %v631 = vpack.c.b16 %v614, %v613
        %v632 = vpack.c.b16 %v616, %v615
        %v681 = vunpack.c.l.b16 %v521
        %v682 = vunpack.c.l.b16 %v522
        %v683 = vunpack.c.l.b16 %v523
        %v684 = vunpack.c.l.b16 %v524
        %v685 = vunpack.c.l.b16 %v525
        %v686 = vunpack.c.l.b16 %v526
        %v687 = vunpack.c.l.b16 %v527
        %v688 = vunpack.c.l.b16 %v528
        %v689 = vunpack.c.l.b16 %v529
        %v690 = vunpack.c.l.b16 %v530
        %v691 = vunpack.c.l.b16 %v531
        %v692 = vunpack.c.l.b16 %v532
        %v693 = vunpack.c.l.b16 %v533
        %v694 = vunpack.c.l.b16 %v534
        %v695 = vunpack.c.l.b16 %v535
        %v696 = vunpack.c.l.b16 %v536
        %v697 = vunpack.c.l.b16 %v537
        %v698 = vunpack.c.l.b16 %v538
        %v699 = vunpack.c.l.b16 %v539
        %v700 = vunpack.c.l.b16 %v540
        %v701 = vunpack.c.l.b16 %v541
        %v702 = vunpack.c.l.b16 %v542
        %v703 = vunpack.c.l.b16 %v543
        %v704 = vunpack.c.l.b16 %v544
        %v705 = vunpack.c.l.b16 %v545
        %v706 = vunpack.c.l.b16 %v546
        %v707 = vunpack.c.l.b16 %v547
        %v708 = vunpack.c.l.b16 %v548
        %v709 = vunpack.c.l.b16 %v549
        %v710 = vunpack.c.l.b16 %v550
        %v711 = vunpack.c.l.b16 %v551
        %v712 = vunpack.c.l.b16 %v552
        %v713 = vpack.c.b16 %v682, %v681
        %v714 = vpack.c.b16 %v684, %v683
        %v715 = vpack.c.b16 %v686, %v685
        %v716 = vpack.c.b16 %v688, %v687
        %v717 = vpack.c.b16 %v690, %v689
        %v718 = vpack.c.b16 %v692, %v691
        %v719 = vpack.c.b16 %v694, %v693
        %v720 = vpack.c.b16 %v696, %v695
        %v721 = vpack.c.b16 %v698, %v697
        %v722 = vpack.c.b16 %v700, %v699
        %v723 = vpack.c.b16 %v702, %v701
        %v724 = vpack.c.b16 %v704, %v703
        %v725 = vpack.c.b16 %v706, %v705
        %v726 = vpack.c.b16 %v708, %v707
        %v727 = vpack.c.b16 %v710, %v709
        %v728 = vpack.c.b16 %v712, %v711
        %v745 = vld [vmem:[#allocation2] sm:$0xff]
        %v746 = vld [vmem:[#allocation2 + $0x8] sm:$0xff]
        %v747 = vld [vmem:[#allocation2 + $0x10] sm:$0xff]
        %v748 = vld [vmem:[#allocation2 + $0x18] sm:$0xff]
        %v749 = vld [vmem:[#allocation2 + $0x20] sm:$0xff]
        %v750 = vld [vmem:[#allocation2 + $0x28] sm:$0xff]
        %v751 = vld [vmem:[#allocation2 + $0x30] sm:$0xff]
        %v752 = vld [vmem:[#allocation2 + $0x38] sm:$0xff]
        %v753 = vld [vmem:[#allocation2 + $0x40] sm:$0xff]
        %v754 = vld [vmem:[#allocation2 + $0x48] sm:$0xff]
        %v755 = vld [vmem:[#allocation2 + $0x50] sm:$0xff]
        %v756 = vld [vmem:[#allocation2 + $0x58] sm:$0xff]
        %v757 = vld [vmem:[#allocation2 + $0x60] sm:$0xff]
        %v758 = vld [vmem:[#allocation2 + $0x68] sm:$0xff]
        %v759 = vld [vmem:[#allocation2 + $0x70] sm:$0xff]
        %v760 = vld [vmem:[#allocation2 + $0x78] sm:$0xff]
        %v761 = vld [vmem:[#allocation2 + $0x80] sm:$0xff]
        %v762 = vld [vmem:[#allocation2 + $0x88] sm:$0xff]
        %v763 = vld [vmem:[#allocation2 + $0x90] sm:$0xff]
        %v764 = vld [vmem:[#allocation2 + $0x98] sm:$0xff]
        %v765 = vld [vmem:[#allocation2 + $0xa0] sm:$0xff]
        %v766 = vld [vmem:[#allocation2 + $0xa8] sm:$0xff]
        %v767 = vld [vmem:[#allocation2 + $0xb0] sm:$0xff]
        %v768 = vld [vmem:[#allocation2 + $0xb8] sm:$0xff]
        %v769 = vld [vmem:[#allocation2 + $0xc0] sm:$0xff]
        %v770 = vld [vmem:[#allocation2 + $0xc8] sm:$0xff]
        %v771 = vld [vmem:[#allocation2 + $0xd0] sm:$0xff]
        %v772 = vld [vmem:[#allocation2 + $0xd8] sm:$0xff]
        %v773 = vld [vmem:[#allocation2 + $0xe0] sm:$0xff]
        %v774 = vld [vmem:[#allocation2 + $0xe8] sm:$0xff]
        %v775 = vld [vmem:[#allocation2 + $0xf0] sm:$0xff]
        %v776 = vld [vmem:[#allocation2 + $0xf8] sm:$0xff]
        %v777 = vld [vmem:[%s383] sm:$0xf]
        %v778 = vld [vmem:[%s383 + $0x4] sm:$0xf]
        %v779 = vld [vmem:[%s383 + $0x8] sm:$0xf]
        %v780 = vld [vmem:[%s383 + $0xc] sm:$0xf]
        %v781 = vld [vmem:[%s383 + $0x10] sm:$0xf]
        %v782 = vld [vmem:[%s383 + $0x14] sm:$0xf]
        %v783 = vld [vmem:[%s383 + $0x18] sm:$0xf]
        %v784 = vld [vmem:[%s383 + $0x1c] sm:$0xf]
        %v785 = vld [vmem:[%s383 + $0x20] sm:$0xf]
        %v786 = vld [vmem:[%s383 + $0x24] sm:$0xf]
        %v787 = vld [vmem:[%s383 + $0x28] sm:$0xf]
        %v788 = vld [vmem:[%s383 + $0x2c] sm:$0xf]
        %v789 = vld [vmem:[%s383 + $0x30] sm:$0xf]
        %v790 = vld [vmem:[%s383 + $0x34] sm:$0xf]
        %v791 = vld [vmem:[%s383 + $0x38] sm:$0xf]
        %v792 = vld [vmem:[%s383 + $0x3c] sm:$0xf]
        %v793 = vld [vmem:[%s383 + $0x40] sm:$0xf]
        %v794 = vld [vmem:[%s383 + $0x44] sm:$0xf]
        %v795 = vld [vmem:[%s383 + $0x48] sm:$0xf]
        %v796 = vld [vmem:[%s383 + $0x4c] sm:$0xf]
        %v797 = vld [vmem:[%s383 + $0x50] sm:$0xf]
        %v798 = vld [vmem:[%s383 + $0x54] sm:$0xf]
        %v799 = vld [vmem:[%s383 + $0x58] sm:$0xf]
        %v800 = vld [vmem:[%s383 + $0x5c] sm:$0xf]
        %v801 = vld [vmem:[%s383 + $0x60] sm:$0xf]
        %v802 = vld [vmem:[%s383 + $0x64] sm:$0xf]
        %v803 = vld [vmem:[%s383 + $0x68] sm:$0xf]
        %v804 = vld [vmem:[%s383 + $0x6c] sm:$0xf]
        %v805 = vld [vmem:[%s383 + $0x70] sm:$0xf]
        %v806 = vld [vmem:[%s383 + $0x74] sm:$0xf]
        %v807 = vld [vmem:[%s383 + $0x78] sm:$0xf]
        %v808 = vld [vmem:[%s383 + $0x7c] sm:$0xf]
        %v841 = vunpack.c.l.b16 %v777
        %v842 = vunpack.c.l.b16 %v778
        %v843 = vunpack.c.l.b16 %v779
        %v844 = vunpack.c.l.b16 %v780
        %v845 = vunpack.c.l.b16 %v781
        %v846 = vunpack.c.l.b16 %v782
        %v847 = vunpack.c.l.b16 %v783
        %v848 = vunpack.c.l.b16 %v784
        %v849 = vunpack.c.l.b16 %v785
        %v850 = vunpack.c.l.b16 %v786
        %v851 = vunpack.c.l.b16 %v787
        %v852 = vunpack.c.l.b16 %v788
        %v853 = vunpack.c.l.b16 %v789
        %v854 = vunpack.c.l.b16 %v790
        %v855 = vunpack.c.l.b16 %v791
        %v856 = vunpack.c.l.b16 %v792
        %v857 = vunpack.c.l.b16 %v793
        %v858 = vunpack.c.l.b16 %v794
        %v859 = vunpack.c.l.b16 %v795
        %v860 = vunpack.c.l.b16 %v796
        %v861 = vunpack.c.l.b16 %v797
        %v862 = vunpack.c.l.b16 %v798
        %v863 = vunpack.c.l.b16 %v799
        %v864 = vunpack.c.l.b16 %v800
        %v865 = vunpack.c.l.b16 %v801
        %v866 = vunpack.c.l.b16 %v802
        %v867 = vunpack.c.l.b16 %v803
        %v868 = vunpack.c.l.b16 %v804
        %v869 = vunpack.c.l.b16 %v805
        %v870 = vunpack.c.l.b16 %v806
        %v871 = vunpack.c.l.b16 %v807
        %v872 = vunpack.c.l.b16 %v808
        %v873 = vpack.c.b16 %v842, %v841
        %v874 = vpack.c.b16 %v844, %v843
        %v875 = vpack.c.b16 %v846, %v845
        %v876 = vpack.c.b16 %v848, %v847
        %v877 = vpack.c.b16 %v850, %v849
        %v878 = vpack.c.b16 %v852, %v851
        %v879 = vpack.c.b16 %v854, %v853
        %v880 = vpack.c.b16 %v856, %v855
        %v881 = vpack.c.b16 %v858, %v857
        %v882 = vpack.c.b16 %v860, %v859
        %v883 = vpack.c.b16 %v862, %v861
        %v884 = vpack.c.b16 %v864, %v863
        %v885 = vpack.c.b16 %v866, %v865
        %v886 = vpack.c.b16 %v868, %v867
        %v887 = vpack.c.b16 %v870, %v869
        %v888 = vpack.c.b16 %v872, %v871
        %905 = vmatprep.subr.bf16.mxu0 0
        %906 = vmatpush1.bf16.msra.mxu0 %v873
        %907 = vmatprep.subr.bf16.mxu0 0
        %908 = vmatpush1.bf16.msra.mxu0 %v874
        %909 = vmatprep.subr.bf16.mxu0 0
        %910 = vmatpush1.bf16.msra.mxu0 %v875
        %911 = vmatprep.subr.bf16.mxu0 0
        %912 = vmatpush1.bf16.msra.mxu0 %v876
        %913 = vmatprep.subr.bf16.mxu0 0
        %914 = vmatpush1.bf16.msra.mxu0 %v877
        %915 = vmatprep.subr.bf16.mxu0 0
        %916 = vmatpush1.bf16.msra.mxu0 %v878
        %917 = vmatprep.subr.bf16.mxu0 0
        %918 = vmatpush1.bf16.msra.mxu0 %v879
        %919 = vmatprep.subr.bf16.mxu0 0
        %920 = vmatpush1.bf16.msra.mxu0 %v880
        %921 = vmatprep.subr.bf16.mxu0 0
        %922 = vmatpush1.bf16.msra.mxu0 %v881
        %923 = vmatprep.subr.bf16.mxu0 0
        %924 = vmatpush1.bf16.msra.mxu0 %v882
        %925 = vmatprep.subr.bf16.mxu0 0
        %926 = vmatpush1.bf16.msra.mxu0 %v883
        %927 = vmatprep.subr.bf16.mxu0 0
        %928 = vmatpush1.bf16.msra.mxu0 %v884
        %929 = vmatprep.subr.bf16.mxu0 0
        %930 = vmatpush1.bf16.msra.mxu0 %v885
        %931 = vmatprep.subr.bf16.mxu0 0
        %932 = vmatpush1.bf16.msra.mxu0 %v886
        %933 = vmatprep.subr.bf16.mxu0 0
        %934 = vmatpush1.bf16.msra.mxu0 %v887
        %935 = vmatprep.subr.bf16.mxu0 0
        %936 = vmatpush1.bf16.msra.mxu0 %v888
        %937 = vmatprep.mubr.bf16.mxu0 %v713
        %938 = vmatmul.mubr.bf16.gmra.mrb[0].mxu0 %v617
        %v939 = vpop.f32.mrb[0].mxu0
        %v940 = vadd.f32 0.0, %v939
        %v941 = vpop.f32.mrb[0].mxu0
        %v942 = vpop.f32.mrb[0].mxu0
        %v943 = vadd.f32 0.0, %v942
        %v944 = vpop.f32.mrb[0].mxu0
        %945 = vmatprep.mubr.bf16.mxu0 %v714
        %946 = vmatmul.mubr.bf16.gmra.mrb[0].mxu0 %v618
        %v947 = vpop.f32.mrb[0].mxu0
        %v948 = vadd.f32 0.0, %v947
        %v949 = vpop.f32.mrb[0].mxu0
        %v950 = vpop.f32.mrb[0].mxu0
        %v951 = vadd.f32 0.0, %v950
        %v952 = vpop.f32.mrb[0].mxu0
        %953 = vmatprep.mubr.bf16.mxu0 %v715
        %954 = vmatmul.mubr.bf16.gmra.mrb[0].mxu0 %v619
        %v955 = vpop.f32.mrb[0].mxu0
        %v956 = vadd.f32 0.0, %v955
        %v957 = vpop.f32.mrb[0].mxu0
        %v958 = vpop.f32.mrb[0].mxu0
        %v959 = vadd.f32 0.0, %v958
        %v960 = vpop.f32.mrb[0].mxu0
        %961 = vmatprep.mubr.bf16.mxu0 %v716
        %962 = vmatmul.mubr.bf16.gmra.mrb[0].mxu0 %v620
        %v963 = vpop.f32.mrb[0].mxu0
        %v964 = vadd.f32 0.0, %v963
        %v965 = vpop.f32.mrb[0].mxu0
        %v966 = vpop.f32.mrb[0].mxu0
        %v967 = vadd.f32 0.0, %v966
        %v968 = vpop.f32.mrb[0].mxu0
        %969 = vmatprep.mubr.bf16.mxu0 %v717
        %970 = vmatmul.mubr.bf16.gmra.mrb[0].mxu0 %v621
        %v971 = vpop.f32.mrb[0].mxu0
        %v972 = vadd.f32 0.0, %v971
        %v973 = vpop.f32.mrb[0].mxu0
        %v974 = vpop.f32.mrb[0].mxu0
        %v975 = vadd.f32 0.0, %v974
        %v976 = vpop.f32.mrb[0].mxu0
        %977 = vmatprep.mubr.bf16.mxu0 %v718
        %978 = vmatmul.mubr.bf16.gmra.mrb[0].mxu0 %v622
        %v979 = vpop.f32.mrb[0].mxu0
        %v980 = vadd.f32 0.0, %v979
        %v981 = vpop.f32.mrb[0].mxu0
        %v982 = vpop.f32.mrb[0].mxu0
        %v983 = vadd.f32 0.0, %v982
        %v984 = vpop.f32.mrb[0].mxu0
        %985 = vmatprep.mubr.bf16.mxu0 %v719
        %986 = vmatmul.mubr.bf16.gmra.mrb[0].mxu0 %v623
        %v987 = vpop.f32.mrb[0].mxu0
        %v988 = vadd.f32 0.0, %v987
        %v989 = vpop.f32.mrb[0].mxu0
        %v990 = vpop.f32.mrb[0].mxu0
        %v991 = vadd.f32 0.0, %v990
        %v992 = vpop.f32.mrb[0].mxu0
        %993 = vmatprep.mubr.bf16.mxu0 %v720
        %994 = vmatmul.mubr.bf16.gmra.mrb[0].mxu0 %v624
        %v995 = vpop.f32.mrb[0].mxu0
        %v996 = vadd.f32 0.0, %v995
        %v997 = vpop.f32.mrb[0].mxu0
        %v998 = vpop.f32.mrb[0].mxu0
        %v999 = vadd.f32 0.0, %v998
        %v1000 = vpop.f32.mrb[0].mxu0
        %1001 = vmatprep.mubr.bf16.mxu0 %v721
        %1002 = vmatmul.mubr.bf16.gmra.mrb[0].mxu0 %v625
        %v1003 = vpop.f32.mrb[0].mxu0
        %v1004 = vadd.f32 0.0, %v1003
        %v1005 = vpop.f32.mrb[0].mxu0
        %v1006 = vpop.f32.mrb[0].mxu0
        %v1007 = vadd.f32 0.0, %v1006
        %v1008 = vpop.f32.mrb[0].mxu0
        %1009 = vmatprep.mubr.bf16.mxu0 %v722
        %1010 = vmatmul.mubr.bf16.gmra.mrb[0].mxu0 %v626
        %v1011 = vpop.f32.mrb[0].mxu0
        %v1012 = vadd.f32 0.0, %v1011
        %v1013 = vpop.f32.mrb[0].mxu0
        %v1014 = vpop.f32.mrb[0].mxu0
        %v1015 = vadd.f32 0.0, %v1014
        %v1016 = vpop.f32.mrb[0].mxu0
        %1017 = vmatprep.mubr.bf16.mxu0 %v723
        %1018 = vmatmul.mubr.bf16.gmra.mrb[0].mxu0 %v627
        %v1019 = vpop.f32.mrb[0].mxu0
        %v1020 = vadd.f32 0.0, %v1019
        %v1021 = vpop.f32.mrb[0].mxu0
        %v1022 = vpop.f32.mrb[0].mxu0
        %v1023 = vadd.f32 0.0, %v1022
        %v1024 = vpop.f32.mrb[0].mxu0
        %1025 = vmatprep.mubr.bf16.mxu0 %v724
        %1026 = vmatmul.mubr.bf16.gmra.mrb[0].mxu0 %v628
        %v1027 = vpop.f32.mrb[0].mxu0
        %v1028 = vadd.f32 0.0, %v1027
        %v1029 = vpop.f32.mrb[0].mxu0
        %v1030 = vpop.f32.mrb[0].mxu0
        %v1031 = vadd.f32 0.0, %v1030
        %v1032 = vpop.f32.mrb[0].mxu0
        %1033 = vmatprep.mubr.bf16.mxu0 %v725
        %1034 = vmatmul.mubr.bf16.gmra.mrb[0].mxu0 %v629
        %v1035 = vpop.f32.mrb[0].mxu0
        %v1036 = vadd.f32 0.0, %v1035
        %v1037 = vpop.f32.mrb[0].mxu0
        %v1038 = vpop.f32.mrb[0].mxu0
        %v1039 = vadd.f32 0.0, %v1038
        %v1040 = vpop.f32.mrb[0].mxu0
        %1041 = vmatprep.mubr.bf16.mxu0 %v726
        %1042 = vmatmul.mubr.bf16.gmra.mrb[0].mxu0 %v630
        %v1043 = vpop.f32.mrb[0].mxu0
        %v1044 = vadd.f32 0.0, %v1043
        %v1045 = vpop.f32.mrb[0].mxu0
        %v1046 = vpop.f32.mrb[0].mxu0
        %v1047 = vadd.f32 0.0, %v1046
        %v1048 = vpop.f32.mrb[0].mxu0
        %1049 = vmatprep.mubr.bf16.mxu0 %v727
        %1050 = vmatmul.mubr.bf16.gmra.mrb[0].mxu0 %v631
        %v1051 = vpop.f32.mrb[0].mxu0
        %v1052 = vadd.f32 0.0, %v1051
        %v1053 = vpop.f32.mrb[0].mxu0
        %v1054 = vpop.f32.mrb[0].mxu0
        %v1055 = vadd.f32 0.0, %v1054
        %v1056 = vpop.f32.mrb[0].mxu0
        %1057 = vmatprep.mubr.bf16.mxu0 %v728
        %1058 = vmatmul.mubr.bf16.gmra.mrb[0].mxu0 %v632
        %v1059 = vpop.f32.mrb[0].mxu0
        %v1060 = vadd.f32 0.0, %v1059
        %v1061 = vpop.f32.mrb[0].mxu0
        %v1062 = vpop.f32.mrb[0].mxu0
        %v1063 = vadd.f32 0.0, %v1062
        %v1064 = vpop.f32.mrb[0].mxu0
        %1065 = vdwg.mxu0
        %v1066 = vadd.f32 %v745, %v940
        %v1067 = vadd.f32 %v746, %v943
        %v1068 = vadd.f32 %v747, %v948
        %v1069 = vadd.f32 %v748, %v951
        %v1070 = vadd.f32 %v749, %v956
        %v1071 = vadd.f32 %v750, %v959
        %v1072 = vadd.f32 %v751, %v964
        %v1073 = vadd.f32 %v752, %v967
        %v1074 = vadd.f32 %v753, %v972
        %v1075 = vadd.f32 %v754, %v975
        %v1076 = vadd.f32 %v755, %v980
        %v1077 = vadd.f32 %v756, %v983
        %v1078 = vadd.f32 %v757, %v988
        %v1079 = vadd.f32 %v758, %v991
        %v1080 = vadd.f32 %v759, %v996
        %v1081 = vadd.f32 %v760, %v999
        %v1082 = vadd.f32 %v761, %v1004
        %v1083 = vadd.f32 %v762, %v1007
        %v1084 = vadd.f32 %v763, %v1012
        %v1085 = vadd.f32 %v764, %v1015
        %v1086 = vadd.f32 %v765, %v1020
        %v1087 = vadd.f32 %v766, %v1023
        %v1088 = vadd.f32 %v767, %v1028
        %v1089 = vadd.f32 %v768, %v1031
        %v1090 = vadd.f32 %v769, %v1036
        %v1091 = vadd.f32 %v770, %v1039
        %v1092 = vadd.f32 %v771, %v1044
        %v1093 = vadd.f32 %v772, %v1047
        %v1094 = vadd.f32 %v773, %v1052
        %v1095 = vadd.f32 %v774, %v1055
        %v1096 = vadd.f32 %v775, %v1060
        %v1097 = vadd.f32 %v776, %v1063
        %1098 = vst [vmem:[#allocation2] sm:$0xff] %v1066
        %1099 = vst [vmem:[#allocation2 + $0x8] sm:$0xff] %v1067
        %1100 = vst [vmem:[#allocation2 + $0x10] sm:$0xff] %v1068
        %1101 = vst [vmem:[#allocation2 + $0x18] sm:$0xff] %v1069
        %1102 = vst [vmem:[#allocation2 + $0x20] sm:$0xff] %v1070
        %1103 = vst [vmem:[#allocation2 + $0x28] sm:$0xff] %v1071
        %1104 = vst [vmem:[#allocation2 + $0x30] sm:$0xff] %v1072
        %1105 = vst [vmem:[#allocation2 + $0x38] sm:$0xff] %v1073
        %1106 = vst [vmem:[#allocation2 + $0x40] sm:$0xff] %v1074
        %1107 = vst [vmem:[#allocation2 + $0x48] sm:$0xff] %v1075
        %1108 = vst [vmem:[#allocation2 + $0x50] sm:$0xff] %v1076
        %1109 = vst [vmem:[#allocation2 + $0x58] sm:$0xff] %v1077
        %1110 = vst [vmem:[#allocation2 + $0x60] sm:$0xff] %v1078
        %1111 = vst [vmem:[#allocation2 + $0x68] sm:$0xff] %v1079
        %1112 = vst [vmem:[#allocation2 + $0x70] sm:$0xff] %v1080
        %1113 = vst [vmem:[#allocation2 + $0x78] sm:$0xff] %v1081
        %1114 = vst [vmem:[#allocation2 + $0x80] sm:$0xff] %v1082
        %1115 = vst [vmem:[#allocation2 + $0x88] sm:$0xff] %v1083
        %1116 = vst [vmem:[#allocation2 + $0x90] sm:$0xff] %v1084
        %1117 = vst [vmem:[#allocation2 + $0x98] sm:$0xff] %v1085
        %1118 = vst [vmem:[#allocation2 + $0xa0] sm:$0xff] %v1086
        %1119 = vst [vmem:[#allocation2 + $0xa8] sm:$0xff] %v1087
        %1120 = vst [vmem:[#allocation2 + $0xb0] sm:$0xff] %v1088
        %1121 = vst [vmem:[#allocation2 + $0xb8] sm:$0xff] %v1089
        %1122 = vst [vmem:[#allocation2 + $0xc0] sm:$0xff] %v1090
        %1123 = vst [vmem:[#allocation2 + $0xc8] sm:$0xff] %v1091
        %1124 = vst [vmem:[#allocation2 + $0xd0] sm:$0xff] %v1092
        %1125 = vst [vmem:[#allocation2 + $0xd8] sm:$0xff] %v1093
        %1126 = vst [vmem:[#allocation2 + $0xe0] sm:$0xff] %v1094
        %1127 = vst [vmem:[#allocation2 + $0xe8] sm:$0xff] %v1095
        %1128 = vst [vmem:[#allocation2 + $0xf0] sm:$0xff] %v1096
        %1129 = vst [vmem:[#allocation2 + $0xf8] sm:$0xff] %v1097
        %s1130 = sld [smem:[#allocation8 + %s58]]
        %p1131 = scmp.eq.s32.totalorder %s1130, 1
        // Predicated region
        $region61: #{tpu_custom_call.1} parent=39 // pred_check
          %p1132 = pneg %p1131
        $region62: #{tpu_custom_call.1} parent=39 // pred_check_branch
          %1134 = sbr.rel (%p1132) target = $region64
        $region63: #{tpu_custom_call.1} parent=39 // pred_region
          %v1135 = vld [vmem:[#allocation2] sm:$0xff]
          %v1136 = vld [vmem:[#allocation2 + $0x8] sm:$0xff]
          %v1137 = vld [vmem:[#allocation2 + $0x10] sm:$0xff]
          %v1138 = vld [vmem:[#allocation2 + $0x18] sm:$0xff]
          %v1139 = vld [vmem:[#allocation2 + $0x20] sm:$0xff]
          %v1140 = vld [vmem:[#allocation2 + $0x28] sm:$0xff]
          %v1141 = vld [vmem:[#allocation2 + $0x30] sm:$0xff]
          %v1142 = vld [vmem:[#allocation2 + $0x38] sm:$0xff]
          %v1143 = vld [vmem:[#allocation2 + $0x40] sm:$0xff]
          %v1144 = vld [vmem:[#allocation2 + $0x48] sm:$0xff]
          %v1145 = vld [vmem:[#allocation2 + $0x50] sm:$0xff]
          %v1146 = vld [vmem:[#allocation2 + $0x58] sm:$0xff]
          %v1147 = vld [vmem:[#allocation2 + $0x60] sm:$0xff]
          %v1148 = vld [vmem:[#allocation2 + $0x68] sm:$0xff]
          %v1149 = vld [vmem:[#allocation2 + $0x70] sm:$0xff]
          %v1150 = vld [vmem:[#allocation2 + $0x78] sm:$0xff]
          %v1151 = vld [vmem:[#allocation2 + $0x80] sm:$0xff]
          %v1152 = vld [vmem:[#allocation2 + $0x88] sm:$0xff]
          %v1153 = vld [vmem:[#allocation2 + $0x90] sm:$0xff]
          %v1154 = vld [vmem:[#allocation2 + $0x98] sm:$0xff]
          %v1155 = vld [vmem:[#allocation2 + $0xa0] sm:$0xff]
          %v1156 = vld [vmem:[#allocation2 + $0xa8] sm:$0xff]
          %v1157 = vld [vmem:[#allocation2 + $0xb0] sm:$0xff]
          %v1158 = vld [vmem:[#allocation2 + $0xb8] sm:$0xff]
          %v1159 = vld [vmem:[#allocation2 + $0xc0] sm:$0xff]
          %v1160 = vld [vmem:[#allocation2 + $0xc8] sm:$0xff]
          %v1161 = vld [vmem:[#allocation2 + $0xd0] sm:$0xff]
          %v1162 = vld [vmem:[#allocation2 + $0xd8] sm:$0xff]
          %v1163 = vld [vmem:[#allocation2 + $0xe0] sm:$0xff]
          %v1164 = vld [vmem:[#allocation2 + $0xe8] sm:$0xff]
          %v1165 = vld [vmem:[#allocation2 + $0xf0] sm:$0xff]
          %v1166 = vld [vmem:[#allocation2 + $0xf8] sm:$0xff]
          %v1167 = vld [vmem:[%s445] sm:$0x1]
          %v1169 = vlaneseq
          %v1170 = vshrl.u32 %v1169, 7
          %v1171 = vsub.s32 0, %v1170
          %v1172 = vrot.slane %v1167, %v1171
          %v1174 = vadd.f32 %v1135, %v1172
          %v1175 = vadd.f32 %v1136, %v1172
          %v1176 = vadd.f32 %v1137, %v1172
          %v1177 = vadd.f32 %v1138, %v1172
          %v1178 = vadd.f32 %v1139, %v1172
          %v1179 = vadd.f32 %v1140, %v1172
          %v1180 = vadd.f32 %v1141, %v1172
          %v1181 = vadd.f32 %v1142, %v1172
          %v1182 = vadd.f32 %v1143, %v1172
          %v1183 = vadd.f32 %v1144, %v1172
          %v1184 = vadd.f32 %v1145, %v1172
          %v1185 = vadd.f32 %v1146, %v1172
          %v1186 = vadd.f32 %v1147, %v1172
          %v1187 = vadd.f32 %v1148, %v1172
          %v1188 = vadd.f32 %v1149, %v1172
          %v1189 = vadd.f32 %v1150, %v1172
          %v1190 = vadd.f32 %v1151, %v1172
          %v1191 = vadd.f32 %v1152, %v1172
          %v1192 = vadd.f32 %v1153, %v1172
          %v1193 = vadd.f32 %v1154, %v1172
          %v1194 = vadd.f32 %v1155, %v1172
          %v1195 = vadd.f32 %v1156, %v1172
          %v1196 = vadd.f32 %v1157, %v1172
          %v1197 = vadd.f32 %v1158, %v1172
          %v1198 = vadd.f32 %v1159, %v1172
          %v1199 = vadd.f32 %v1160, %v1172
          %v1200 = vadd.f32 %v1161, %v1172
          %v1201 = vadd.f32 %v1162, %v1172
          %v1202 = vadd.f32 %v1163, %v1172
          %v1203 = vadd.f32 %v1164, %v1172
          %v1204 = vadd.f32 %v1165, %v1172
          %v1205 = vadd.f32 %v1166, %v1172
          %v1206 = vld [vmem:[%s392] sm:$0xff]
          %v1207 = vld [vmem:[%s392 + $0x8] sm:$0xff]
          %v1208 = vld [vmem:[%s392 + $0x10] sm:$0xff]
          %v1209 = vld [vmem:[%s392 + $0x18] sm:$0xff]
          %v1210 = vld [vmem:[%s392 + $0x20] sm:$0xff]
          %v1211 = vld [vmem:[%s392 + $0x28] sm:$0xff]
          %v1212 = vld [vmem:[%s392 + $0x30] sm:$0xff]
          %v1213 = vld [vmem:[%s392 + $0x38] sm:$0xff]
          %v1214 = vld [vmem:[%s392 + $0x40] sm:$0xff]
          %v1215 = vld [vmem:[%s392 + $0x48] sm:$0xff]
          %v1216 = vld [vmem:[%s392 + $0x50] sm:$0xff]
          %v1217 = vld [vmem:[%s392 + $0x58] sm:$0xff]
          %v1218 = vld [vmem:[%s392 + $0x60] sm:$0xff]
          %v1219 = vld [vmem:[%s392 + $0x68] sm:$0xff]
          %v1220 = vld [vmem:[%s392 + $0x70] sm:$0xff]
          %v1221 = vld [vmem:[%s392 + $0x78] sm:$0xff]
          %v1222 = vld [vmem:[%s392 + $0x80] sm:$0xff]
          %v1223 = vld [vmem:[%s392 + $0x88] sm:$0xff]
          %v1224 = vld [vmem:[%s392 + $0x90] sm:$0xff]
          %v1225 = vld [vmem:[%s392 + $0x98] sm:$0xff]
          %v1226 = vld [vmem:[%s392 + $0xa0] sm:$0xff]
          %v1227 = vld [vmem:[%s392 + $0xa8] sm:$0xff]
          %v1228 = vld [vmem:[%s392 + $0xb0] sm:$0xff]
          %v1229 = vld [vmem:[%s392 + $0xb8] sm:$0xff]
          %v1230 = vld [vmem:[%s392 + $0xc0] sm:$0xff]
          %v1231 = vld [vmem:[%s392 + $0xc8] sm:$0xff]
          %v1232 = vld [vmem:[%s392 + $0xd0] sm:$0xff]
          %v1233 = vld [vmem:[%s392 + $0xd8] sm:$0xff]
          %v1234 = vld [vmem:[%s392 + $0xe0] sm:$0xff]
          %v1235 = vld [vmem:[%s392 + $0xe8] sm:$0xff]
          %v1236 = vld [vmem:[%s392 + $0xf0] sm:$0xff]
          %v1237 = vld [vmem:[%s392 + $0xf8] sm:$0xff]
          %v1238 = vadd.f32 %v1174, %v1206
          %v1239 = vadd.f32 %v1175, %v1207
          %v1240 = vadd.f32 %v1176, %v1208
          %v1241 = vadd.f32 %v1177, %v1209
          %v1242 = vadd.f32 %v1178, %v1210
          %v1243 = vadd.f32 %v1179, %v1211
          %v1244 = vadd.f32 %v1180, %v1212
          %v1245 = vadd.f32 %v1181, %v1213
          %v1246 = vadd.f32 %v1182, %v1214
          %v1247 = vadd.f32 %v1183, %v1215
          %v1248 = vadd.f32 %v1184, %v1216
          %v1249 = vadd.f32 %v1185, %v1217
          %v1250 = vadd.f32 %v1186, %v1218
          %v1251 = vadd.f32 %v1187, %v1219
          %v1252 = vadd.f32 %v1188, %v1220
          %v1253 = vadd.f32 %v1189, %v1221
          %v1254 = vadd.f32 %v1190, %v1222
          %v1255 = vadd.f32 %v1191, %v1223
          %v1256 = vadd.f32 %v1192, %v1224
          %v1257 = vadd.f32 %v1193, %v1225
          %v1258 = vadd.f32 %v1194, %v1226
          %v1259 = vadd.f32 %v1195, %v1227
          %v1260 = vadd.f32 %v1196, %v1228
          %v1261 = vadd.f32 %v1197, %v1229
          %v1262 = vadd.f32 %v1198, %v1230
          %v1263 = vadd.f32 %v1199, %v1231
          %v1264 = vadd.f32 %v1200, %v1232
          %v1265 = vadd.f32 %v1201, %v1233
          %v1266 = vadd.f32 %v1202, %v1234
          %v1267 = vadd.f32 %v1203, %v1235
          %v1268 = vadd.f32 %v1204, %v1236
          %v1269 = vadd.f32 %v1205, %v1237
          %1270 = vst [vmem:[%s437] sm:$0xff] %v1238
          %1271 = vst [vmem:[%s437 + $0x8] sm:$0xff] %v1239
          %1272 = vst [vmem:[%s437 + $0x10] sm:$0xff] %v1240
          %1273 = vst [vmem:[%s437 + $0x18] sm:$0xff] %v1241
          %1274 = vst [vmem:[%s437 + $0x20] sm:$0xff] %v1242
          %1275 = vst [vmem:[%s437 + $0x28] sm:$0xff] %v1243
          %1276 = vst [vmem:[%s437 + $0x30] sm:$0xff] %v1244
          %1277 = vst [vmem:[%s437 + $0x38] sm:$0xff] %v1245
          %1278 = vst [vmem:[%s437 + $0x40] sm:$0xff] %v1246
          %1279 = vst [vmem:[%s437 + $0x48] sm:$0xff] %v1247
          %1280 = vst [vmem:[%s437 + $0x50] sm:$0xff] %v1248
          %1281 = vst [vmem:[%s437 + $0x58] sm:$0xff] %v1249
          %1282 = vst [vmem:[%s437 + $0x60] sm:$0xff] %v1250
          %1283 = vst [vmem:[%s437 + $0x68] sm:$0xff] %v1251
          %1284 = vst [vmem:[%s437 + $0x70] sm:$0xff] %v1252
          %1285 = vst [vmem:[%s437 + $0x78] sm:$0xff] %v1253
          %1286 = vst [vmem:[%s437 + $0x80] sm:$0xff] %v1254
          %1287 = vst [vmem:[%s437 + $0x88] sm:$0xff] %v1255
          %1288 = vst [vmem:[%s437 + $0x90] sm:$0xff] %v1256
          %1289 = vst [vmem:[%s437 + $0x98] sm:$0xff] %v1257
          %1290 = vst [vmem:[%s437 + $0xa0] sm:$0xff] %v1258
          %1291 = vst [vmem:[%s437 + $0xa8] sm:$0xff] %v1259
          %1292 = vst [vmem:[%s437 + $0xb0] sm:$0xff] %v1260
          %1293 = vst [vmem:[%s437 + $0xb8] sm:$0xff] %v1261
          %1294 = vst [vmem:[%s437 + $0xc0] sm:$0xff] %v1262
          %1295 = vst [vmem:[%s437 + $0xc8] sm:$0xff] %v1263
          %1296 = vst [vmem:[%s437 + $0xd0] sm:$0xff] %v1264
          %1297 = vst [vmem:[%s437 + $0xd8] sm:$0xff] %v1265
          %1298 = vst [vmem:[%s437 + $0xe0] sm:$0xff] %v1266
          %1299 = vst [vmem:[%s437 + $0xe8] sm:$0xff] %v1267
          %1300 = vst [vmem:[%s437 + $0xf0] sm:$0xff] %v1268
          %1301 = vst [vmem:[%s437 + $0xf8] sm:$0xff] %v1269
        $region64: #{tpu_custom_call.1} parent=39 // pred_fallthru
          _
        %s1302 = sand.u32 %s221, 1
        %s1303 = scalar_lea.sflag [#allocation11], %s1302
        %s1304 = sand.u32 %s221, 1
        %s1305 = smul.addr %s1304, 256
        %s1306 = scalar_lea.vmem [#allocation17], %s1305
        // Predicated region
        $region65: #{tpu_custom_call.1} parent=39 // pred_check
          %p1307 = pneg %p231
        $region66: #{tpu_custom_call.1} parent=39 // pred_check_branch
          %1309 = sbr.rel (%p1307) target = $region68
        $region67: #{tpu_custom_call.1} parent=39 // pred_region
          %s1310 = sld [smem:[#allocation4 + %s58]]
          %s1311 = smul.u32 32, %s57
          %s1313 = ssub.s32 4096, 4096
          %1314 = vsyncadd %s1303, %s1313
          %s1315 = smul.addr %s1311, 4
          %s1316 = sadd.s32 %s1310, %s1315
          %s1317 = smul.addr %s1316, 128
          %s1318 = scalar_lea.hbm %s10, %s1317
          %s1319 = sshll.u32 %s1306, 4
          %s1320 = int_to_ptr.vmem [resolvable:$true] %s1319
          %1325 = dma.vmem_to_hbm [thread:$0]  %s1320, 4096, %s1318, %s1303, 128, 512, 8
        $region68: #{tpu_custom_call.1} parent=39 // pred_fallthru
          _
      $region40: #{tpu_custom_call.1} parent=5 // pred_fallthru
        _
      %p1326 = scmp.le.s32.totalorder 2, %s48
      // Predicated region
      $region69: #{tpu_custom_call.1} parent=5 // pred_check
        %p1327 = pneg %p1326
      $region70: #{tpu_custom_call.1} parent=5 // pred_check_branch
        %1329 = sbr.rel (%p1327) target = $region72
      $region71: #{tpu_custom_call.1} parent=5 // pred_region
        %s1330 = ssub.s32 %s48, 2
        // Predicated region
        $region73: #{tpu_custom_call.1} parent=71 // pred_check
          %p1331 = pneg %p237
        $region74: #{tpu_custom_call.1} parent=71 // pred_check_branch
          %1333 = sbr.rel (%p1331) target = $region76
        $region75: #{tpu_custom_call.1} parent=71 // pred_region
          %s1334 = sand.u32 %s222, 1
          %s1335 = scalar_lea.sflag [#allocation11], %s1334
          %s1336 = sand.u32 %s222, 1
          %s1337 = smul.addr %s1336, 256
          %s1338 = scalar_lea.vmem [#allocation17], %s1337
          %1339 = dma.done %s1335, 4096
        $region76: #{tpu_custom_call.1} parent=71 // pred_fallthru
          _
      $region72: #{tpu_custom_call.1} parent=5 // pred_fallthru
        _
    $region6: #{tpu_custom_call.1} parent=1 // loop_footer
      %s52 = sadd.s32 1, %s48
    $region7: #{tpu_custom_call.1} parent=1 // loop_footer_branch
      %47 = sbr.rel target = $region3
    $region8: #{tpu_custom_call.1} parent=1 // loop_exit
      _
    %1340 = vsyncpa [#allocation10], 1
    %s1341 = scalar_lea.sflag [#allocation10], 1
    %1342 = vsyncpa %s1341, 1
    %1343 = vsyncpa [#allocation13], 1
    %s1344 = scalar_lea.sflag [#allocation13], 1
    %1345 = vsyncpa %s1344, 1
    %1346 = vsyncpa [#allocation16], 1
    %s1347 = scalar_lea.sflag [#allocation16], 1
    %1348 = vsyncpa %s1347, 1
    %1349 = vsyncpa [#allocation11], 1
    %s1350 = scalar_lea.sflag [#allocation11], 1
    %1351 = vsyncpa %s1350, 1

</llo_original>
